<compile_context>
chip_gen: v5e
topology: v5e:2x2
jax: 0.10.0
libtpu: 0.0.40
codegen_flags: <defaults>
</compile_context>

<pallas_src>
import jax
import jax.numpy as jnp
from jax.experimental import pallas as pl
from jax.experimental.pallas import tpu as pltpu

IN_FEATURES = 10
OUT_FEATURES = 5
GROUP = 128              # batch rows packed along the lane axis per packed row
MAX_TILE_GROUPS = 512    # packed rows per grid step (= 65536 batch rows / step)


def _round_up(x, m):
    return ((x + m - 1) // m) * m


def linear_relu_kernel(x_ref, w_ref, b_ref, o_ref):
    # x_ref: (tile_g, GROUP*10)  f32   lane-dense packed batch rows
    # w_ref: (GROUP*10, GROUP*5) bf16  block-diagonal weight (grid-invariant)
    # b_ref: (1, GROUP*5)        f32   tiled bias            (grid-invariant)
    # o_ref: (tile_g, GROUP*5)   f32   lane-dense output
    x_bf16 = x_ref[...].astype(jnp.bfloat16)          # bf16 operands, f32 accum
    y = jnp.dot(x_bf16, w_ref[...], preferred_element_type=jnp.float32)
    o_ref[...] = jnp.maximum(y + b_ref[...], 0.0).astype(o_ref.dtype)


def pack_params(w, b, *, group=GROUP):
    """One-time (init-time) packing of the (10, 5) weight / (5,) bias.

    Returns the bf16 block-diagonal weight kron(I_group, W) of shape
    (group*10, group*5) and the f32 tiled bias (1, group*5).
    Call this once per parameter set, OUTSIDE the per-step hot path.
    """
    w = jnp.asarray(w, jnp.float32)
    b = jnp.asarray(b, jnp.float32)
    w_big = jnp.kron(jnp.eye(group, dtype=jnp.float32), w).astype(jnp.bfloat16)
    b_big = jnp.tile(b, group).reshape(1, group * OUT_FEATURES)
    return w_big, b_big


def _pick_tile_groups(n_groups):
    if n_groups <= 8:
        return n_groups   # block dim == full array dim -> layout-legal for tiny B
    # >=2 grid steps when possible (v7x megacore sharding of the "parallel" axis),
    # steps large enough to amortize fixed per-step cost, capped so the
    # double-buffered f32 x/out tiles stay well inside scoped VMEM everywhere.
    return min(MAX_TILE_GROUPS, _round_up(pl.cdiv(n_groups, 2), 8))


def base_model_forward(x, w_big, b_big):
    """relu(x @ W + b) for x: (B, 10). w_big/b_big come from pack_params()."""
    B = x.shape[0]
    padded_b = _round_up(B, GROUP)
    if padded_b != B:
        # <=127 dead rows, zero-filled so the bf16 cast / matmul stay finite.
        x = jnp.pad(x, ((0, padded_b - B), (0, 0)))
    n_groups = padded_b // GROUP
    tile_g = _pick_tile_groups(n_groups)
    n_steps = pl.cdiv(n_groups, tile_g)

    # Copy-free contiguous reshape: 128 batch rows share one lane-dense row.
    x2 = x.reshape(n_groups, GROUP * IN_FEATURES)

    out = pl.pallas_call(
        linear_relu_kernel,
        out_shape=jax.ShapeDtypeStruct((n_groups, GROUP * OUT_FEATURES), x.dtype),
        grid=(n_steps,),
        in_specs=[
            pl.BlockSpec((tile_g, GROUP * IN_FEATURES), lambda i: (i, 0)),
            # Grid-invariant blocks: DMA'd once, revisited every step.
            pl.BlockSpec((GROUP * IN_FEATURES, GROUP * OUT_FEATURES), lambda i: (0, 0)),
            pl.BlockSpec((1, GROUP * OUT_FEATURES), lambda i: (0, 0)),
        ],
        out_specs=pl.BlockSpec((tile_g, GROUP * OUT_FEATURES), lambda i: (i, 0)),
        compiler_params=pltpu.CompilerParams(
            dimension_semantics=("parallel",),   # independent steps -> v7x megacore
        ),
    )(x2, w_big, b_big)

    y = out.reshape(padded_b, OUT_FEATURES)
    return y if padded_b == B else y[:B]


def init_params(key):
    # Deterministic init mimicking nn.Linear's default U(-1/sqrt(in), 1/sqrt(in)).
    kw, kb = jax.random.split(key)
    bound = 1.0 / jnp.sqrt(jnp.float32(IN_FEATURES))
    # Stored as (in_features, out_features) so the kernel computes x @ W + b
    # (matches PyTorch's x @ weight.T + bias for weight of shape (5, 10)).
    w = jax.random.uniform(kw, (IN_FEATURES, OUT_FEATURES), jnp.float32,
                           minval=-bound, maxval=bound)
    b = jax.random.uniform(kb, (OUT_FEATURES,), jnp.float32,
                           minval=-bound, maxval=bound)
    return w, b


if __name__ == "__main__":
    key = jax.random.PRNGKey(0)
    k_x, k_x2, k_p = jax.random.split(key, 3)
    w, b = init_params(k_p)
    w_big, b_big = pack_params(w, b)   # packed once, outside the hot path

    # Primary small test (batch=8, features=10), as implied by nn.Linear(10, 5).
    B = 8
    x = jax.random.normal(k_x, (B, IN_FEATURES), jnp.float32)
    out = jax.block_until_ready(base_model_forward(x, w_big, b_big))
    ref = jnp.maximum(x @ w + b, 0.0)
    assert out.shape == (B, OUT_FEATURES)
    # bf16 matmul operands -> compare against the f32 reference with ~1e-2 slack.
    assert jnp.allclose(out, ref, atol=2e-2, rtol=2e-2)

    # Secondary test: batch padding (1200 -> 1280), multi-group, multi-step grid
    # with a partial (masked) last block.
    B2 = 1200
    x2 = jax.random.normal(k_x2, (B2, IN_FEATURES), jnp.float32)
    out2 = jax.block_until_ready(base_model_forward(x2, w_big, b_big))
    ref2 = jnp.maximum(x2 @ w + b, 0.0)
    assert out2.shape == (B2, OUT_FEATURES)
    assert jnp.allclose(out2, ref2, atol=2e-2, rtol=2e-2)

    print("KERNEL_OK")
</pallas_src>

<mosaic_0001>
module attributes {stable_mosaic.version = 11 : i64} {
  func.func @linear_relu_kernel(%arg0: i32, %arg1: memref<1x1280xf32, #tpu.memory_space<vmem>>, %arg2: memref<1280x640xbf16, #tpu.memory_space<vmem>>, %arg3: memref<1x640xf32, #tpu.memory_space<vmem>>, %arg4: memref<1x640xf32, #tpu.memory_space<vmem>>) attributes {dimension_semantics = [#tpu.dimension_semantics<parallel>], iteration_bounds = array<i64: 1>, scalar_prefetch = 0 : i64, scratch_operands = 0 : i64, tpu.core_type = #tpu.core_type<tc>, window_params = [{transform_indices = @transform_0, window_bounds = array<i64: 1, 1280>}, {pipeline_mode = #tpu.pipeline_mode<synchronous>, transform_indices = @transform_1, window_bounds = array<i64: 1280, 640>}, {pipeline_mode = #tpu.pipeline_mode<synchronous>, transform_indices = @transform_2, window_bounds = array<i64: 1, 640>}, {transform_indices = @transform_3, window_bounds = array<i64: 1, 640>}]} {
    %c0 = arith.constant 0 : index
    %c0_0 = arith.constant 0 : index
    %0 = vector.load %arg1[%c0, %c0_0] : memref<1x1280xf32, #tpu.memory_space<vmem>>, vector<1x1280xf32>
    %1 = arith.truncf %0 : vector<1x1280xf32> to vector<1x1280xbf16>
    %c0_1 = arith.constant 0 : index
    %c0_2 = arith.constant 0 : index
    %2 = vector.load %arg2[%c0_1, %c0_2] : memref<1280x640xbf16, #tpu.memory_space<vmem>>, vector<1280x640xbf16>
    %cst = arith.constant dense<0.000000e+00> : vector<1x640xf32>
    %3 = tpu.matmul %1, %2, %cst {dimension_numbers = #tpu.dot_dimension_numbers<[1], [0], [0], [1], [0, 0, 1, 1], [], []>} : vector<1x1280xbf16>, vector<1280x640xbf16>, vector<1x640xf32> -> vector<1x640xf32>
    %c0_3 = arith.constant 0 : index
    %c0_4 = arith.constant 0 : index
    %4 = vector.load %arg3[%c0_3, %c0_4] : memref<1x640xf32, #tpu.memory_space<vmem>>, vector<1x640xf32>
    %5 = arith.addf %3, %4 : vector<1x640xf32>
    %cst_5 = arith.constant 0.000000e+00 : f32
    %6 = vector.broadcast %cst_5 : f32 to vector<1x640xf32>
    %7 = arith.maximumf %5, %6 : vector<1x640xf32>
    %c0_6 = arith.constant 0 : index
    %c0_7 = arith.constant 0 : index
    %8 = vector.load %arg4[%c0_6, %c0_7] : memref<1x640xf32, #tpu.memory_space<vmem>>, vector<1x640xf32>
    tpu.vector_store %arg4[%c0_6, %c0_7], %7 {strides = array<i32>} : memref<1x640xf32, #tpu.memory_space<vmem>>, vector<1x640xf32>,
    return
  }
  func.func @transform_0(%arg0: i32) -> (i32, i32) {
    %c0_i32 = arith.constant 0 : i32
    %c0_i32_0 = arith.constant 0 : i32
    return %arg0, %c0_i32 : i32, i32
  }
  func.func @transform_1(%arg0: i32) -> (i32, i32) {
    %c0_i32 = arith.constant 0 : i32
    %c0_i32_0 = arith.constant 0 : i32
    %c0_i32_1 = arith.constant 0 : i32
    return %c0_i32, %c0_i32_0 : i32, i32
  }
  func.func @transform_2(%arg0: i32) -> (i32, i32) {
    %c0_i32 = arith.constant 0 : i32
    %c0_i32_0 = arith.constant 0 : i32
    %c0_i32_1 = arith.constant 0 : i32
    return %c0_i32, %c0_i32_0 : i32, i32
  }
  func.func @transform_3(%arg0: i32) -> (i32, i32) {
    %c0_i32 = arith.constant 0 : i32
    %c0_i32_0 = arith.constant 0 : i32
    return %arg0, %c0_i32 : i32, i32
  }
}

</mosaic_0001>

<llo_original>
// kernel: tpu_custom_call.1
$region0: #{tpu_custom_call.1}
  #allocation0 [shape = 'u32[]', space=smem, size = 0x4, offset = 0x4, fixed_abs, tag = 'smem constant byte address 0x4 - core index']
  #allocation1 [shape = 'u32[72,128]{1,0:T(1,128)}', space=vmem, size = 0x9000, scoped, tag = 'internal scratch']
  %s0 = inlined_call_operand.hbm [shape: f32[1,1280], index: 0, kind: input, shape index: {}]
  %s1 = inlined_call_operand.hbm [shape: bf16[1280,640], index: 1, kind: input, shape index: {}]
  %s2 = inlined_call_operand.hbm [shape: f32[1,640], index: 2, kind: input, shape index: {}]
  %s3 = inlined_call_operand.hbm [shape: f32[1,640], index: 3, kind: output, shape index: {}]
  %s4 = sld [smem:[#allocation0]]
  $region34: #{tpu_custom_call.1} parent=0
    _
  %s6 = ssub.s32 1, %s4
  %s7 = scalar_select 0, %s6, %s4
  $region1: #{tpu_custom_call.1} parent=0
    #allocation2 [shape = 'u8[5120]{0}', space=vmem, size = 0x1400, scoped, tag = 'input window, operand 0, single buffered']
    #allocation3 [shape = 's32[1]{0}', space=sflag, size = 0x4, scoped, tag = 'scoped memory for tpu_custom_call.1']
    #allocation4 [shape = 's32[1]{0}', space=sflag, size = 0x4, scoped, tag = 'scoped memory for tpu_custom_call.1']
    #allocation5 [shape = 'u8[1638400]{0}', space=vmem, size = 0x190000, scoped, tag = 'input window, operand 1, single buffered']
    #allocation6 [shape = 's32[1]{0}', space=sflag, size = 0x4, scoped, tag = 'scoped memory for tpu_custom_call.1']
    #allocation7 [shape = 'u8[2560]{0}', space=vmem, size = 0xc00, scoped, tag = 'input window, operand 2, single buffered']
    #allocation8 [shape = 'u8[2560]{0}', space=vmem, size = 0xc00, scoped, tag = 'output window, operand 0, single buffered']
    %8 = vsyncpa [#allocation3], 0
    %9 = vsyncpa [#allocation6], 0
    %10 = vsyncpa [#allocation4], 0
    // Predicated region
    $region2: #{tpu_custom_call.1} parent=1 // pred_check
      _
    $region3: #{tpu_custom_call.1} parent=1 // pred_check_branch
      %12 = sbr.rel (0) target = $region5
    $region4: #{tpu_custom_call.1} parent=1 // pred_region
      %14 = vsyncadd [#allocation3], 0
      %s16 = sshll.u32 %s0, 4
      %s17 = int_to_ptr.hbm [resolvable:$true] %s16
      %s18 = sshll.u32 [#allocation2], 4
      %s19 = int_to_ptr.vmem [resolvable:$true] %s18
      %21 = dma.hbm_to_vmem [thread:$0]  %s17, 160, %s19, [#allocation3]
    $region5: #{tpu_custom_call.1} parent=1 // pred_fallthru
      _
    // Predicated region
    $region6: #{tpu_custom_call.1} parent=1 // pred_check
      _
    $region7: #{tpu_custom_call.1} parent=1 // pred_check_branch
      %23 = sbr.rel (0) target = $region9
    $region8: #{tpu_custom_call.1} parent=1 // pred_region
      %25 = vsyncadd [#allocation6], 0
      %s26 = sshll.u32 %s1, 4
      %s27 = int_to_ptr.hbm [resolvable:$true] %s26
      %s28 = sshll.u32 [#allocation5], 4
      %s29 = int_to_ptr.vmem [resolvable:$true] %s28
      %34 = dma.hbm_to_vmem [thread:$0]  %s27, 51200, %s29, [#allocation6], 320, 320, 20
    $region9: #{tpu_custom_call.1} parent=1 // pred_fallthru
      _
    // Predicated region
    $region10: #{tpu_custom_call.1} parent=1 // pred_check
      _
    $region11: #{tpu_custom_call.1} parent=1 // pred_check_branch
      %36 = sbr.rel (0) target = $region13
    $region12: #{tpu_custom_call.1} parent=1 // pred_region
      %38 = vsyncadd [#allocation6], 0
      %s40 = sshll.u32 %s2, 4
      %s41 = int_to_ptr.hbm [resolvable:$true] %s40
      %s42 = sshll.u32 [#allocation7], 4
      %s43 = int_to_ptr.vmem [resolvable:$true] %s42
      %45 = dma.hbm_to_vmem [thread:$0]  %s41, 80, %s43, [#allocation6]
    $region13: #{tpu_custom_call.1} parent=1 // pred_fallthru
      _
    // Predicated region
    $region14: #{tpu_custom_call.1} parent=1 // pred_check
      _
    $region15: #{tpu_custom_call.1} parent=1 // pred_check_branch
      %47 = sbr.rel (0) target = $region17
    $region16: #{tpu_custom_call.1} parent=1 // pred_region
      %49 = dma.done [#allocation3], 160
    $region17: #{tpu_custom_call.1} parent=1 // pred_fallthru
      _
    // Predicated region
    $region18: #{tpu_custom_call.1} parent=1 // pred_check
      _
    $region19: #{tpu_custom_call.1} parent=1 // pred_check_branch
      %51 = sbr.rel (0) target = $region21
    $region20: #{tpu_custom_call.1} parent=1 // pred_region
      %53 = dma.done [#allocation6], 51200
    $region21: #{tpu_custom_call.1} parent=1 // pred_fallthru
      _
    // Predicated region
    $region22: #{tpu_custom_call.1} parent=1 // pred_check
      _
    $region23: #{tpu_custom_call.1} parent=1 // pred_check_branch
      %55 = sbr.rel (0) target = $region25
    $region24: #{tpu_custom_call.1} parent=1 // pred_region
      %57 = dma.done [#allocation6], 80
    $region25: #{tpu_custom_call.1} parent=1 // pred_fallthru
      _
    %v58 = vld [vmem:[#allocation2] sm:$0xff]
    %v59 = vld [vmem:[#allocation2 + $0x8] sm:$0x3]
    %v62 = vperm.slane %v58, 0
    %v63 = vperm.slane %v58, 1
    %v64 = vperm.slane %v58, 2
    %v65 = vperm.slane %v58, 3
    %v66 = vperm.slane %v58, 4
    %v67 = vperm.slane %v58, 5
    %v68 = vperm.slane %v58, 6
    %v69 = vperm.slane %v58, 7
    %v70 = vperm.slane %v59, 0
    %v71 = vperm.slane %v59, 1
    %v82 = vpack.c.bf16 %v62, %v62
    %v83 = vpack.c.bf16 %v63, %v63
    %v84 = vpack.c.bf16 %v64, %v64
    %v85 = vpack.c.bf16 %v65, %v65
    %v86 = vpack.c.bf16 %v66, %v66
    %v87 = vpack.c.bf16 %v67, %v67
    %v88 = vpack.c.bf16 %v68, %v68
    %v89 = vpack.c.bf16 %v69, %v69
    %v90 = vpack.c.bf16 %v70, %v70
    %v91 = vpack.c.bf16 %v71, %v71
    %v92 = vld [vmem:[#allocation5] sm:$0xff]
    %v93 = vld [vmem:[#allocation5 + $0x8] sm:$0xff]
    %v94 = vld [vmem:[#allocation5 + $0x10] sm:$0xf]
    %v95 = vld [vmem:[#allocation5 + $0x14] sm:$0xff]
    %v96 = vld [vmem:[#allocation5 + $0x1c] sm:$0xff]
    %v97 = vld [vmem:[#allocation5 + $0x24] sm:$0xf]
    %v98 = vld [vmem:[#allocation5 + $0x28] sm:$0xff]
    %v99 = vld [vmem:[#allocation5 + $0x30] sm:$0xff]
    %v100 = vld [vmem:[#allocation5 + $0x38] sm:$0xf]
    %v101 = vld [vmem:[#allocation5 + $0x3c] sm:$0xff]
    %v102 = vld [vmem:[#allocation5 + $0x44] sm:$0xff]
    %v103 = vld [vmem:[#allocation5 + $0x4c] sm:$0xf]
    %v104 = vld [vmem:[#allocation5 + $0x50] sm:$0xff]
    %v105 = vld [vmem:[#allocation5 + $0x58] sm:$0xff]
    %v106 = vld [vmem:[#allocation5 + $0x60] sm:$0xf]
    %v107 = vld [vmem:[#allocation5 + $0x64] sm:$0xff]
    %v108 = vld [vmem:[#allocation5 + $0x6c] sm:$0xff]
    %v109 = vld [vmem:[#allocation5 + $0x74] sm:$0xf]
    %v110 = vld [vmem:[#allocation5 + $0x78] sm:$0xff]
    %v111 = vld [vmem:[#allocation5 + $0x80] sm:$0xff]
    %v112 = vld [vmem:[#allocation5 + $0x88] sm:$0xf]
    %v113 = vld [vmem:[#allocation5 + $0x8c] sm:$0xff]
    %v114 = vld [vmem:[#allocation5 + $0x94] sm:$0xff]
    %v115 = vld [vmem:[#allocation5 + $0x9c] sm:$0xf]
    %v116 = vld [vmem:[#allocation5 + $0xa0] sm:$0xff]
    %v117 = vld [vmem:[#allocation5 + $0xa8] sm:$0xff]
    %v118 = vld [vmem:[#allocation5 + $0xb0] sm:$0xf]
    %v119 = vld [vmem:[#allocation5 + $0xb4] sm:$0xff]
    %v120 = vld [vmem:[#allocation5 + $0xbc] sm:$0xff]
    %v121 = vld [vmem:[#allocation5 + $0xc4] sm:$0xf]
    %v122 = vld [vmem:[#allocation5 + $0xc8] sm:$0xff]
    %v123 = vld [vmem:[#allocation5 + $0xd0] sm:$0xff]
    %v124 = vld [vmem:[#allocation5 + $0xd8] sm:$0xf]
    %v125 = vld [vmem:[#allocation5 + $0xdc] sm:$0xff]
    %v126 = vld [vmem:[#allocation5 + $0xe4] sm:$0xff]
    %v127 = vld [vmem:[#allocation5 + $0xec] sm:$0xf]
    %v128 = vld [vmem:[#allocation5 + $0xf0] sm:$0xff]
    %v129 = vld [vmem:[#allocation5 + $0xf8] sm:$0xff]
    %v130 = vld [vmem:[#allocation5 + $0x100] sm:$0xf]
    %v131 = vld [vmem:[#allocation5 + $0x104] sm:$0xff]
    %v132 = vld [vmem:[#allocation5 + $0x10c] sm:$0xff]
    %v133 = vld [vmem:[#allocation5 + $0x114] sm:$0xf]
    %v134 = vld [vmem:[#allocation5 + $0x118] sm:$0xff]
    %v135 = vld [vmem:[#allocation5 + $0x120] sm:$0xff]
    %v136 = vld [vmem:[#allocation5 + $0x128] sm:$0xf]
    %v137 = vld [vmem:[#allocation5 + $0x12c] sm:$0xff]
    %v138 = vld [vmem:[#allocation5 + $0x134] sm:$0xff]
    %v139 = vld [vmem:[#allocation5 + $0x13c] sm:$0xf]
    %v140 = vld [vmem:[#allocation5 + $0x140] sm:$0xff]
    %v141 = vld [vmem:[#allocation5 + $0x148] sm:$0xff]
    %v142 = vld [vmem:[#allocation5 + $0x150] sm:$0xf]
    %v143 = vld [vmem:[#allocation5 + $0x154] sm:$0xff]
    %v144 = vld [vmem:[#allocation5 + $0x15c] sm:$0xff]
    %v145 = vld [vmem:[#allocation5 + $0x164] sm:$0xf]
    %v146 = vld [vmem:[#allocation5 + $0x168] sm:$0xff]
    %v147 = vld [vmem:[#allocation5 + $0x170] sm:$0xff]
    %v148 = vld [vmem:[#allocation5 + $0x178] sm:$0xf]
    %v149 = vld [vmem:[#allocation5 + $0x17c] sm:$0xff]
    %v150 = vld [vmem:[#allocation5 + $0x184] sm:$0xff]
    %v151 = vld [vmem:[#allocation5 + $0x18c] sm:$0xf]
    %v152 = vld [vmem:[#allocation5 + $0x190] sm:$0xff]
    %v153 = vld [vmem:[#allocation5 + $0x198] sm:$0xff]
    %v154 = vld [vmem:[#allocation5 + $0x1a0] sm:$0xf]
    %v155 = vld [vmem:[#allocation5 + $0x1a4] sm:$0xff]
    %v156 = vld [vmem:[#allocation5 + $0x1ac] sm:$0xff]
    %v157 = vld [vmem:[#allocation5 + $0x1b4] sm:$0xf]
    %v158 = vld [vmem:[#allocation5 + $0x1b8] sm:$0xff]
    %v159 = vld [vmem:[#allocation5 + $0x1c0] sm:$0xff]
    %v160 = vld [vmem:[#allocation5 + $0x1c8] sm:$0xf]
    %v161 = vld [vmem:[#allocation5 + $0x1cc] sm:$0xff]
    %v162 = vld [vmem:[#allocation5 + $0x1d4] sm:$0xff]
    %v163 = vld [vmem:[#allocation5 + $0x1dc] sm:$0xf]
    %v164 = vld [vmem:[#allocation5 + $0x1e0] sm:$0xff]
    %v165 = vld [vmem:[#allocation5 + $0x1e8] sm:$0xff]
    %v166 = vld [vmem:[#allocation5 + $0x1f0] sm:$0xf]
    %v167 = vld [vmem:[#allocation5 + $0x1f4] sm:$0xff]
    %v168 = vld [vmem:[#allocation5 + $0x1fc] sm:$0xff]
    %v169 = vld [vmem:[#allocation5 + $0x204] sm:$0xf]
    %v170 = vld [vmem:[#allocation5 + $0x208] sm:$0xff]
    %v171 = vld [vmem:[#allocation5 + $0x210] sm:$0xff]
    %v172 = vld [vmem:[#allocation5 + $0x218] sm:$0xf]
    %v173 = vld [vmem:[#allocation5 + $0x21c] sm:$0xff]
    %v174 = vld [vmem:[#allocation5 + $0x224] sm:$0xff]
    %v175 = vld [vmem:[#allocation5 + $0x22c] sm:$0xf]
    %v176 = vld [vmem:[#allocation5 + $0x230] sm:$0xff]
    %v177 = vld [vmem:[#allocation5 + $0x238] sm:$0xff]
    %v178 = vld [vmem:[#allocation5 + $0x240] sm:$0xf]
    %v179 = vld [vmem:[#allocation5 + $0x244] sm:$0xff]
    %v180 = vld [vmem:[#allocation5 + $0x24c] sm:$0xff]
    %v181 = vld [vmem:[#allocation5 + $0x254] sm:$0xf]
    %v182 = vld [vmem:[#allocation5 + $0x258] sm:$0xff]
    %v183 = vld [vmem:[#allocation5 + $0x260] sm:$0xff]
    %v184 = vld [vmem:[#allocation5 + $0x268] sm:$0xf]
    %v185 = vld [vmem:[#allocation5 + $0x26c] sm:$0xff]
    %v186 = vld [vmem:[#allocation5 + $0x274] sm:$0xff]
    %v187 = vld [vmem:[#allocation5 + $0x27c] sm:$0xf]
    %v188 = vld [vmem:[#allocation5 + $0x280] sm:$0xff]
    %v189 = vld [vmem:[#allocation5 + $0x288] sm:$0xff]
    %v190 = vld [vmem:[#allocation5 + $0x290] sm:$0xf]
    %v191 = vld [vmem:[#allocation5 + $0x294] sm:$0xff]
    %v192 = vld [vmem:[#allocation5 + $0x29c] sm:$0xff]
    %v193 = vld [vmem:[#allocation5 + $0x2a4] sm:$0xf]
    %v194 = vld [vmem:[#allocation5 + $0x2a8] sm:$0xff]
    %v195 = vld [vmem:[#allocation5 + $0x2b0] sm:$0xff]
    %v196 = vld [vmem:[#allocation5 + $0x2b8] sm:$0xf]
    %v197 = vld [vmem:[#allocation5 + $0x2bc] sm:$0xff]
    %v198 = vld [vmem:[#allocation5 + $0x2c4] sm:$0xff]
    %v199 = vld [vmem:[#allocation5 + $0x2cc] sm:$0xf]
    %v200 = vld [vmem:[#allocation5 + $0x2d0] sm:$0xff]
    %v201 = vld [vmem:[#allocation5 + $0x2d8] sm:$0xff]
    %v202 = vld [vmem:[#allocation5 + $0x2e0] sm:$0xf]
    %v203 = vld [vmem:[#allocation5 + $0x2e4] sm:$0xff]
    %v204 = vld [vmem:[#allocation5 + $0x2ec] sm:$0xff]
    %v205 = vld [vmem:[#allocation5 + $0x2f4] sm:$0xf]
    %v206 = vld [vmem:[#allocation5 + $0x2f8] sm:$0xff]
    %v207 = vld [vmem:[#allocation5 + $0x300] sm:$0xff]
    %v208 = vld [vmem:[#allocation5 + $0x308] sm:$0xf]
    %v209 = vld [vmem:[#allocation5 + $0x30c] sm:$0xff]
    %v210 = vld [vmem:[#allocation5 + $0x314] sm:$0xff]
    %v211 = vld [vmem:[#allocation5 + $0x31c] sm:$0xf]
    %v212 = vld [vmem:[#allocation5 + $0x320] sm:$0xff]
    %v213 = vld [vmem:[#allocation5 + $0x328] sm:$0xff]
    %v214 = vld [vmem:[#allocation5 + $0x330] sm:$0xf]
    %v215 = vld [vmem:[#allocation5 + $0x334] sm:$0xff]
    %v216 = vld [vmem:[#allocation5 + $0x33c] sm:$0xff]
    %v217 = vld [vmem:[#allocation5 + $0x344] sm:$0xf]
    %v218 = vld [vmem:[#allocation5 + $0x348] sm:$0xff]
    %v219 = vld [vmem:[#allocation5 + $0x350] sm:$0xff]
    %v220 = vld [vmem:[#allocation5 + $0x358] sm:$0xf]
    %v221 = vld [vmem:[#allocation5 + $0x35c] sm:$0xff]
    %v222 = vld [vmem:[#allocation5 + $0x364] sm:$0xff]
    %v223 = vld [vmem:[#allocation5 + $0x36c] sm:$0xf]
    %v224 = vld [vmem:[#allocation5 + $0x370] sm:$0xff]
    %v225 = vld [vmem:[#allocation5 + $0x378] sm:$0xff]
    %v226 = vld [vmem:[#allocation5 + $0x380] sm:$0xf]
    %v227 = vld [vmem:[#allocation5 + $0x384] sm:$0xff]
    %v228 = vld [vmem:[#allocation5 + $0x38c] sm:$0xff]
    %v229 = vld [vmem:[#allocation5 + $0x394] sm:$0xf]
    %v230 = vld [vmem:[#allocation5 + $0x398] sm:$0xff]
    %v231 = vld [vmem:[#allocation5 + $0x3a0] sm:$0xff]
    %v232 = vld [vmem:[#allocation5 + $0x3a8] sm:$0xf]
    %v233 = vld [vmem:[#allocation5 + $0x3ac] sm:$0xff]
    %v234 = vld [vmem:[#allocation5 + $0x3b4] sm:$0xff]
    %v235 = vld [vmem:[#allocation5 + $0x3bc] sm:$0xf]
    %v236 = vld [vmem:[#allocation5 + $0x3c0] sm:$0xff]
    %v237 = vld [vmem:[#allocation5 + $0x3c8] sm:$0xff]
    %v238 = vld [vmem:[#allocation5 + $0x3d0] sm:$0xf]
    %v239 = vld [vmem:[#allocation5 + $0x3d4] sm:$0xff]
    %v240 = vld [vmem:[#allocation5 + $0x3dc] sm:$0xff]
    %v241 = vld [vmem:[#allocation5 + $0x3e4] sm:$0xf]
    %v242 = vld [vmem:[#allocation5 + $0x3e8] sm:$0xff]
    %v243 = vld [vmem:[#allocation5 + $0x3f0] sm:$0xff]
    %v244 = vld [vmem:[#allocation5 + $0x3f8] sm:$0xf]
    %v245 = vld [vmem:[#allocation5 + $0x3fc] sm:$0xff]
    %v246 = vld [vmem:[#allocation5 + $0x404] sm:$0xff]
    %v247 = vld [vmem:[#allocation5 + $0x40c] sm:$0xf]
    %v248 = vld [vmem:[#allocation5 + $0x410] sm:$0xff]
    %v249 = vld [vmem:[#allocation5 + $0x418] sm:$0xff]
    %v250 = vld [vmem:[#allocation5 + $0x420] sm:$0xf]
    %v251 = vld [vmem:[#allocation5 + $0x424] sm:$0xff]
    %v252 = vld [vmem:[#allocation5 + $0x42c] sm:$0xff]
    %v253 = vld [vmem:[#allocation5 + $0x434] sm:$0xf]
    %v254 = vld [vmem:[#allocation5 + $0x438] sm:$0xff]
    %v255 = vld [vmem:[#allocation5 + $0x440] sm:$0xff]
    %v256 = vld [vmem:[#allocation5 + $0x448] sm:$0xf]
    %v257 = vld [vmem:[#allocation5 + $0x44c] sm:$0xff]
    %v258 = vld [vmem:[#allocation5 + $0x454] sm:$0xff]
    %v259 = vld [vmem:[#allocation5 + $0x45c] sm:$0xf]
    %v260 = vld [vmem:[#allocation5 + $0x460] sm:$0xff]
    %v261 = vld [vmem:[#allocation5 + $0x468] sm:$0xff]
    %v262 = vld [vmem:[#allocation5 + $0x470] sm:$0xf]
    %v263 = vld [vmem:[#allocation5 + $0x474] sm:$0xff]
    %v264 = vld [vmem:[#allocation5 + $0x47c] sm:$0xff]
    %v265 = vld [vmem:[#allocation5 + $0x484] sm:$0xf]
    %v266 = vld [vmem:[#allocation5 + $0x488] sm:$0xff]
    %v267 = vld [vmem:[#allocation5 + $0x490] sm:$0xff]
    %v268 = vld [vmem:[#allocation5 + $0x498] sm:$0xf]
    %v269 = vld [vmem:[#allocation5 + $0x49c] sm:$0xff]
    %v270 = vld [vmem:[#allocation5 + $0x4a4] sm:$0xff]
    %v271 = vld [vmem:[#allocation5 + $0x4ac] sm:$0xf]
    %v272 = vld [vmem:[#allocation5 + $0x4b0] sm:$0xff]
    %v273 = vld [vmem:[#allocation5 + $0x4b8] sm:$0xff]
    %v274 = vld [vmem:[#allocation5 + $0x4c0] sm:$0xf]
    %v275 = vld [vmem:[#allocation5 + $0x4c4] sm:$0xff]
    %v276 = vld [vmem:[#allocation5 + $0x4cc] sm:$0xff]
    %v277 = vld [vmem:[#allocation5 + $0x4d4] sm:$0xf]
    %v278 = vld [vmem:[#allocation5 + $0x4d8] sm:$0xff]
    %v279 = vld [vmem:[#allocation5 + $0x4e0] sm:$0xff]
    %v280 = vld [vmem:[#allocation5 + $0x4e8] sm:$0xf]
    %v281 = vld [vmem:[#allocation5 + $0x4ec] sm:$0xff]
    %v282 = vld [vmem:[#allocation5 + $0x4f4] sm:$0xff]
    %v283 = vld [vmem:[#allocation5 + $0x4fc] sm:$0xf]
    %v284 = vld [vmem:[#allocation5 + $0x500] sm:$0xff]
    %v285 = vld [vmem:[#allocation5 + $0x508] sm:$0xff]
    %v286 = vld [vmem:[#allocation5 + $0x510] sm:$0xf]
    %v287 = vld [vmem:[#allocation5 + $0x514] sm:$0xff]
    %v288 = vld [vmem:[#allocation5 + $0x51c] sm:$0xff]
    %v289 = vld [vmem:[#allocation5 + $0x524] sm:$0xf]
    %v290 = vld [vmem:[#allocation5 + $0x528] sm:$0xff]
    %v291 = vld [vmem:[#allocation5 + $0x530] sm:$0xff]
    %v292 = vld [vmem:[#allocation5 + $0x538] sm:$0xf]
    %v293 = vld [vmem:[#allocation5 + $0x53c] sm:$0xff]
    %v294 = vld [vmem:[#allocation5 + $0x544] sm:$0xff]
    %v295 = vld [vmem:[#allocation5 + $0x54c] sm:$0xf]
    %v296 = vld [vmem:[#allocation5 + $0x550] sm:$0xff]
    %v297 = vld [vmem:[#allocation5 + $0x558] sm:$0xff]
    %v298 = vld [vmem:[#allocation5 + $0x560] sm:$0xf]
    %v299 = vld [vmem:[#allocation5 + $0x564] sm:$0xff]
    %v300 = vld [vmem:[#allocation5 + $0x56c] sm:$0xff]
    %v301 = vld [vmem:[#allocation5 + $0x574] sm:$0xf]
    %v302 = vld [vmem:[#allocation5 + $0x578] sm:$0xff]
    %v303 = vld [vmem:[#allocation5 + $0x580] sm:$0xff]
    %v304 = vld [vmem:[#allocation5 + $0x588] sm:$0xf]
    %v305 = vld [vmem:[#allocation5 + $0x58c] sm:$0xff]
    %v306 = vld [vmem:[#allocation5 + $0x594] sm:$0xff]
    %v307 = vld [vmem:[#allocation5 + $0x59c] sm:$0xf]
    %v308 = vld [vmem:[#allocation5 + $0x5a0] sm:$0xff]
    %v309 = vld [vmem:[#allocation5 + $0x5a8] sm:$0xff]
    %v310 = vld [vmem:[#allocation5 + $0x5b0] sm:$0xf]
    %v311 = vld [vmem:[#allocation5 + $0x5b4] sm:$0xff]
    %v312 = vld [vmem:[#allocation5 + $0x5bc] sm:$0xff]
    %v313 = vld [vmem:[#allocation5 + $0x5c4] sm:$0xf]
    %v314 = vld [vmem:[#allocation5 + $0x5c8] sm:$0xff]
    %v315 = vld [vmem:[#allocation5 + $0x5d0] sm:$0xff]
    %v316 = vld [vmem:[#allocation5 + $0x5d8] sm:$0xf]
    %v317 = vld [vmem:[#allocation5 + $0x5dc] sm:$0xff]
    %v318 = vld [vmem:[#allocation5 + $0x5e4] sm:$0xff]
    %v319 = vld [vmem:[#allocation5 + $0x5ec] sm:$0xf]
    %v320 = vld [vmem:[#allocation5 + $0x5f0] sm:$0xff]
    %v321 = vld [vmem:[#allocation5 + $0x5f8] sm:$0xff]
    %v322 = vld [vmem:[#allocation5 + $0x600] sm:$0xf]
    %v323 = vld [vmem:[#allocation5 + $0x604] sm:$0xff]
    %v324 = vld [vmem:[#allocation5 + $0x60c] sm:$0xff]
    %v325 = vld [vmem:[#allocation5 + $0x614] sm:$0xf]
    %v326 = vld [vmem:[#allocation5 + $0x618] sm:$0xff]
    %v327 = vld [vmem:[#allocation5 + $0x620] sm:$0xff]
    %v328 = vld [vmem:[#allocation5 + $0x628] sm:$0xf]
    %v329 = vld [vmem:[#allocation5 + $0x62c] sm:$0xff]
    %v330 = vld [vmem:[#allocation5 + $0x634] sm:$0xff]
    %v331 = vld [vmem:[#allocation5 + $0x63c] sm:$0xf]
    %v332 = vld [vmem:[#allocation5 + $0x640] sm:$0xff]
    %v333 = vld [vmem:[#allocation5 + $0x648] sm:$0xff]
    %v334 = vld [vmem:[#allocation5 + $0x650] sm:$0xf]
    %v335 = vld [vmem:[#allocation5 + $0x654] sm:$0xff]
    %v336 = vld [vmem:[#allocation5 + $0x65c] sm:$0xff]
    %v337 = vld [vmem:[#allocation5 + $0x664] sm:$0xf]
    %v338 = vld [vmem:[#allocation5 + $0x668] sm:$0xff]
    %v339 = vld [vmem:[#allocation5 + $0x670] sm:$0xff]
    %v340 = vld [vmem:[#allocation5 + $0x678] sm:$0xf]
    %v341 = vld [vmem:[#allocation5 + $0x67c] sm:$0xff]
    %v342 = vld [vmem:[#allocation5 + $0x684] sm:$0xff]
    %v343 = vld [vmem:[#allocation5 + $0x68c] sm:$0xf]
    %v344 = vld [vmem:[#allocation5 + $0x690] sm:$0xff]
    %v345 = vld [vmem:[#allocation5 + $0x698] sm:$0xff]
    %v346 = vld [vmem:[#allocation5 + $0x6a0] sm:$0xf]
    %v347 = vld [vmem:[#allocation5 + $0x6a4] sm:$0xff]
    %v348 = vld [vmem:[#allocation5 + $0x6ac] sm:$0xff]
    %v349 = vld [vmem:[#allocation5 + $0x6b4] sm:$0xf]
    %v350 = vld [vmem:[#allocation5 + $0x6b8] sm:$0xff]
    %v351 = vld [vmem:[#allocation5 + $0x6c0] sm:$0xff]
    %v352 = vld [vmem:[#allocation5 + $0x6c8] sm:$0xf]
    %v353 = vld [vmem:[#allocation5 + $0x6cc] sm:$0xff]
    %v354 = vld [vmem:[#allocation5 + $0x6d4] sm:$0xff]
    %v355 = vld [vmem:[#allocation5 + $0x6dc] sm:$0xf]
    %v356 = vld [vmem:[#allocation5 + $0x6e0] sm:$0xff]
    %v357 = vld [vmem:[#allocation5 + $0x6e8] sm:$0xff]
    %v358 = vld [vmem:[#allocation5 + $0x6f0] sm:$0xf]
    %v359 = vld [vmem:[#allocation5 + $0x6f4] sm:$0xff]
    %v360 = vld [vmem:[#allocation5 + $0x6fc] sm:$0xff]
    %v361 = vld [vmem:[#allocation5 + $0x704] sm:$0xf]
    %v362 = vld [vmem:[#allocation5 + $0x708] sm:$0xff]
    %v363 = vld [vmem:[#allocation5 + $0x710] sm:$0xff]
    %v364 = vld [vmem:[#allocation5 + $0x718] sm:$0xf]
    %v365 = vld [vmem:[#allocation5 + $0x71c] sm:$0xff]
    %v366 = vld [vmem:[#allocation5 + $0x724] sm:$0xff]
    %v367 = vld [vmem:[#allocation5 + $0x72c] sm:$0xf]
    %v368 = vld [vmem:[#allocation5 + $0x730] sm:$0xff]
    %v369 = vld [vmem:[#allocation5 + $0x738] sm:$0xff]
    %v370 = vld [vmem:[#allocation5 + $0x740] sm:$0xf]
    %v371 = vld [vmem:[#allocation5 + $0x744] sm:$0xff]
    %v372 = vld [vmem:[#allocation5 + $0x74c] sm:$0xff]
    %v373 = vld [vmem:[#allocation5 + $0x754] sm:$0xf]
    %v374 = vld [vmem:[#allocation5 + $0x758] sm:$0xff]
    %v375 = vld [vmem:[#allocation5 + $0x760] sm:$0xff]
    %v376 = vld [vmem:[#allocation5 + $0x768] sm:$0xf]
    %v377 = vld [vmem:[#allocation5 + $0x76c] sm:$0xff]
    %v378 = vld [vmem:[#allocation5 + $0x774] sm:$0xff]
    %v379 = vld [vmem:[#allocation5 + $0x77c] sm:$0xf]
    %v380 = vld [vmem:[#allocation5 + $0x780] sm:$0xff]
    %v381 = vld [vmem:[#allocation5 + $0x788] sm:$0xff]
    %v382 = vld [vmem:[#allocation5 + $0x790] sm:$0xf]
    %v383 = vld [vmem:[#allocation5 + $0x794] sm:$0xff]
    %v384 = vld [vmem:[#allocation5 + $0x79c] sm:$0xff]
    %v385 = vld [vmem:[#allocation5 + $0x7a4] sm:$0xf]
    %v386 = vld [vmem:[#allocation5 + $0x7a8] sm:$0xff]
    %v387 = vld [vmem:[#allocation5 + $0x7b0] sm:$0xff]
    %v388 = vld [vmem:[#allocation5 + $0x7b8] sm:$0xf]
    %v389 = vld [vmem:[#allocation5 + $0x7bc] sm:$0xff]
    %v390 = vld [vmem:[#allocation5 + $0x7c4] sm:$0xff]
    %v391 = vld [vmem:[#allocation5 + $0x7cc] sm:$0xf]
    %v392 = vld [vmem:[#allocation5 + $0x7d0] sm:$0xff]
    %v393 = vld [vmem:[#allocation5 + $0x7d8] sm:$0xff]
    %v394 = vld [vmem:[#allocation5 + $0x7e0] sm:$0xf]
    %v395 = vld [vmem:[#allocation5 + $0x7e4] sm:$0xff]
    %v396 = vld [vmem:[#allocation5 + $0x7ec] sm:$0xff]
    %v397 = vld [vmem:[#allocation5 + $0x7f4] sm:$0xf]
    %v398 = vld [vmem:[#allocation5 + $0x7f8] sm:$0xff]
    %v399 = vld [vmem:[#allocation5 + $0x800] sm:$0xff]
    %v400 = vld [vmem:[#allocation5 + $0x808] sm:$0xf]
    %v401 = vld [vmem:[#allocation5 + $0x80c] sm:$0xff]
    %v402 = vld [vmem:[#allocation5 + $0x814] sm:$0xff]
    %v403 = vld [vmem:[#allocation5 + $0x81c] sm:$0xf]
    %v404 = vld [vmem:[#allocation5 + $0x820] sm:$0xff]
    %v405 = vld [vmem:[#allocation5 + $0x828] sm:$0xff]
    %v406 = vld [vmem:[#allocation5 + $0x830] sm:$0xf]
    %v407 = vld [vmem:[#allocation5 + $0x834] sm:$0xff]
    %v408 = vld [vmem:[#allocation5 + $0x83c] sm:$0xff]
    %v409 = vld [vmem:[#allocation5 + $0x844] sm:$0xf]
    %v410 = vld [vmem:[#allocation5 + $0x848] sm:$0xff]
    %v411 = vld [vmem:[#allocation5 + $0x850] sm:$0xff]
    %v412 = vld [vmem:[#allocation5 + $0x858] sm:$0xf]
    %v413 = vld [vmem:[#allocation5 + $0x85c] sm:$0xff]
    %v414 = vld [vmem:[#allocation5 + $0x864] sm:$0xff]
    %v415 = vld [vmem:[#allocation5 + $0x86c] sm:$0xf]
    %v416 = vld [vmem:[#allocation5 + $0x870] sm:$0xff]
    %v417 = vld [vmem:[#allocation5 + $0x878] sm:$0xff]
    %v418 = vld [vmem:[#allocation5 + $0x880] sm:$0xf]
    %v419 = vld [vmem:[#allocation5 + $0x884] sm:$0xff]
    %v420 = vld [vmem:[#allocation5 + $0x88c] sm:$0xff]
    %v421 = vld [vmem:[#allocation5 + $0x894] sm:$0xf]
    %v422 = vld [vmem:[#allocation5 + $0x898] sm:$0xff]
    %v423 = vld [vmem:[#allocation5 + $0x8a0] sm:$0xff]
    %v424 = vld [vmem:[#allocation5 + $0x8a8] sm:$0xf]
    %v425 = vld [vmem:[#allocation5 + $0x8ac] sm:$0xff]
    %v426 = vld [vmem:[#allocation5 + $0x8b4] sm:$0xff]
    %v427 = vld [vmem:[#allocation5 + $0x8bc] sm:$0xf]
    %v428 = vld [vmem:[#allocation5 + $0x8c0] sm:$0xff]
    %v429 = vld [vmem:[#allocation5 + $0x8c8] sm:$0xff]
    %v430 = vld [vmem:[#allocation5 + $0x8d0] sm:$0xf]
    %v431 = vld [vmem:[#allocation5 + $0x8d4] sm:$0xff]
    %v432 = vld [vmem:[#allocation5 + $0x8dc] sm:$0xff]
    %v433 = vld [vmem:[#allocation5 + $0x8e4] sm:$0xf]
    %v434 = vld [vmem:[#allocation5 + $0x8e8] sm:$0xff]
    %v435 = vld [vmem:[#allocation5 + $0x8f0] sm:$0xff]
    %v436 = vld [vmem:[#allocation5 + $0x8f8] sm:$0xf]
    %v437 = vld [vmem:[#allocation5 + $0x8fc] sm:$0xff]
    %v438 = vld [vmem:[#allocation5 + $0x904] sm:$0xff]
    %v439 = vld [vmem:[#allocation5 + $0x90c] sm:$0xf]
    %v440 = vld [vmem:[#allocation5 + $0x910] sm:$0xff]
    %v441 = vld [vmem:[#allocation5 + $0x918] sm:$0xff]
    %v442 = vld [vmem:[#allocation5 + $0x920] sm:$0xf]
    %v443 = vld [vmem:[#allocation5 + $0x924] sm:$0xff]
    %v444 = vld [vmem:[#allocation5 + $0x92c] sm:$0xff]
    %v445 = vld [vmem:[#allocation5 + $0x934] sm:$0xf]
    %v446 = vld [vmem:[#allocation5 + $0x938] sm:$0xff]
    %v447 = vld [vmem:[#allocation5 + $0x940] sm:$0xff]
    %v448 = vld [vmem:[#allocation5 + $0x948] sm:$0xf]
    %v449 = vld [vmem:[#allocation5 + $0x94c] sm:$0xff]
    %v450 = vld [vmem:[#allocation5 + $0x954] sm:$0xff]
    %v451 = vld [vmem:[#allocation5 + $0x95c] sm:$0xf]
    %v452 = vld [vmem:[#allocation5 + $0x960] sm:$0xff]
    %v453 = vld [vmem:[#allocation5 + $0x968] sm:$0xff]
    %v454 = vld [vmem:[#allocation5 + $0x970] sm:$0xf]
    %v455 = vld [vmem:[#allocation5 + $0x974] sm:$0xff]
    %v456 = vld [vmem:[#allocation5 + $0x97c] sm:$0xff]
    %v457 = vld [vmem:[#allocation5 + $0x984] sm:$0xf]
    %v458 = vld [vmem:[#allocation5 + $0x988] sm:$0xff]
    %v459 = vld [vmem:[#allocation5 + $0x990] sm:$0xff]
    %v460 = vld [vmem:[#allocation5 + $0x998] sm:$0xf]
    %v461 = vld [vmem:[#allocation5 + $0x99c] sm:$0xff]
    %v462 = vld [vmem:[#allocation5 + $0x9a4] sm:$0xff]
    %v463 = vld [vmem:[#allocation5 + $0x9ac] sm:$0xf]
    %v464 = vld [vmem:[#allocation5 + $0x9b0] sm:$0xff]
    %v465 = vld [vmem:[#allocation5 + $0x9b8] sm:$0xff]
    %v466 = vld [vmem:[#allocation5 + $0x9c0] sm:$0xf]
    %v467 = vld [vmem:[#allocation5 + $0x9c4] sm:$0xff]
    %v468 = vld [vmem:[#allocation5 + $0x9cc] sm:$0xff]
    %v469 = vld [vmem:[#allocation5 + $0x9d4] sm:$0xf]
    %v470 = vld [vmem:[#allocation5 + $0x9d8] sm:$0xff]
    %v471 = vld [vmem:[#allocation5 + $0x9e0] sm:$0xff]
    %v472 = vld [vmem:[#allocation5 + $0x9e8] sm:$0xf]
    %v473 = vld [vmem:[#allocation5 + $0x9ec] sm:$0xff]
    %v474 = vld [vmem:[#allocation5 + $0x9f4] sm:$0xff]
    %v475 = vld [vmem:[#allocation5 + $0x9fc] sm:$0xf]
    %v476 = vld [vmem:[#allocation5 + $0xa00] sm:$0xff]
    %v477 = vld [vmem:[#allocation5 + $0xa08] sm:$0xff]
    %v478 = vld [vmem:[#allocation5 + $0xa10] sm:$0xf]
    %v479 = vld [vmem:[#allocation5 + $0xa14] sm:$0xff]
    %v480 = vld [vmem:[#allocation5 + $0xa1c] sm:$0xff]
    %v481 = vld [vmem:[#allocation5 + $0xa24] sm:$0xf]
    %v482 = vld [vmem:[#allocation5 + $0xa28] sm:$0xff]
    %v483 = vld [vmem:[#allocation5 + $0xa30] sm:$0xff]
    %v484 = vld [vmem:[#allocation5 + $0xa38] sm:$0xf]
    %v485 = vld [vmem:[#allocation5 + $0xa3c] sm:$0xff]
    %v486 = vld [vmem:[#allocation5 + $0xa44] sm:$0xff]
    %v487 = vld [vmem:[#allocation5 + $0xa4c] sm:$0xf]
    %v488 = vld [vmem:[#allocation5 + $0xa50] sm:$0xff]
    %v489 = vld [vmem:[#allocation5 + $0xa58] sm:$0xff]
    %v490 = vld [vmem:[#allocation5 + $0xa60] sm:$0xf]
    %v491 = vld [vmem:[#allocation5 + $0xa64] sm:$0xff]
    %v492 = vld [vmem:[#allocation5 + $0xa6c] sm:$0xff]
    %v493 = vld [vmem:[#allocation5 + $0xa74] sm:$0xf]
    %v494 = vld [vmem:[#allocation5 + $0xa78] sm:$0xff]
    %v495 = vld [vmem:[#allocation5 + $0xa80] sm:$0xff]
    %v496 = vld [vmem:[#allocation5 + $0xa88] sm:$0xf]
    %v497 = vld [vmem:[#allocation5 + $0xa8c] sm:$0xff]
    %v498 = vld [vmem:[#allocation5 + $0xa94] sm:$0xff]
    %v499 = vld [vmem:[#allocation5 + $0xa9c] sm:$0xf]
    %v500 = vld [vmem:[#allocation5 + $0xaa0] sm:$0xff]
    %v501 = vld [vmem:[#allocation5 + $0xaa8] sm:$0xff]
    %v502 = vld [vmem:[#allocation5 + $0xab0] sm:$0xf]
    %v503 = vld [vmem:[#allocation5 + $0xab4] sm:$0xff]
    %v504 = vld [vmem:[#allocation5 + $0xabc] sm:$0xff]
    %v505 = vld [vmem:[#allocation5 + $0xac4] sm:$0xf]
    %v506 = vld [vmem:[#allocation5 + $0xac8] sm:$0xff]
    %v507 = vld [vmem:[#allocation5 + $0xad0] sm:$0xff]
    %v508 = vld [vmem:[#allocation5 + $0xad8] sm:$0xf]
    %v509 = vld [vmem:[#allocation5 + $0xadc] sm:$0xff]
    %v510 = vld [vmem:[#allocation5 + $0xae4] sm:$0xff]
    %v511 = vld [vmem:[#allocation5 + $0xaec] sm:$0xf]
    %v512 = vld [vmem:[#allocation5 + $0xaf0] sm:$0xff]
    %v513 = vld [vmem:[#allocation5 + $0xaf8] sm:$0xff]
    %v514 = vld [vmem:[#allocation5 + $0xb00] sm:$0xf]
    %v515 = vld [vmem:[#allocation5 + $0xb04] sm:$0xff]
    %v516 = vld [vmem:[#allocation5 + $0xb0c] sm:$0xff]
    %v517 = vld [vmem:[#allocation5 + $0xb14] sm:$0xf]
    %v518 = vld [vmem:[#allocation5 + $0xb18] sm:$0xff]
    %v519 = vld [vmem:[#allocation5 + $0xb20] sm:$0xff]
    %v520 = vld [vmem:[#allocation5 + $0xb28] sm:$0xf]
    %v521 = vld [vmem:[#allocation5 + $0xb2c] sm:$0xff]
    %v522 = vld [vmem:[#allocation5 + $0xb34] sm:$0xff]
    %v523 = vld [vmem:[#allocation5 + $0xb3c] sm:$0xf]
    %v524 = vld [vmem:[#allocation5 + $0xb40] sm:$0xff]
    %v525 = vld [vmem:[#allocation5 + $0xb48] sm:$0xff]
    %v526 = vld [vmem:[#allocation5 + $0xb50] sm:$0xf]
    %v527 = vld [vmem:[#allocation5 + $0xb54] sm:$0xff]
    %v528 = vld [vmem:[#allocation5 + $0xb5c] sm:$0xff]
    %v529 = vld [vmem:[#allocation5 + $0xb64] sm:$0xf]
    %v530 = vld [vmem:[#allocation5 + $0xb68] sm:$0xff]
    %v531 = vld [vmem:[#allocation5 + $0xb70] sm:$0xff]
    %v532 = vld [vmem:[#allocation5 + $0xb78] sm:$0xf]
    %v533 = vld [vmem:[#allocation5 + $0xb7c] sm:$0xff]
    %v534 = vld [vmem:[#allocation5 + $0xb84] sm:$0xff]
    %v535 = vld [vmem:[#allocation5 + $0xb8c] sm:$0xf]
    %v536 = vld [vmem:[#allocation5 + $0xb90] sm:$0xff]
    %v537 = vld [vmem:[#allocation5 + $0xb98] sm:$0xff]
    %v538 = vld [vmem:[#allocation5 + $0xba0] sm:$0xf]
    %v539 = vld [vmem:[#allocation5 + $0xba4] sm:$0xff]
    %v540 = vld [vmem:[#allocation5 + $0xbac] sm:$0xff]
    %v541 = vld [vmem:[#allocation5 + $0xbb4] sm:$0xf]
    %v542 = vld [vmem:[#allocation5 + $0xbb8] sm:$0xff]
    %v543 = vld [vmem:[#allocation5 + $0xbc0] sm:$0xff]
    %v544 = vld [vmem:[#allocation5 + $0xbc8] sm:$0xf]
    %v545 = vld [vmem:[#allocation5 + $0xbcc] sm:$0xff]
    %v546 = vld [vmem:[#allocation5 + $0xbd4] sm:$0xff]
    %v547 = vld [vmem:[#allocation5 + $0xbdc] sm:$0xf]
    %v548 = vld [vmem:[#allocation5 + $0xbe0] sm:$0xff]
    %v549 = vld [vmem:[#allocation5 + $0xbe8] sm:$0xff]
    %v550 = vld [vmem:[#allocation5 + $0xbf0] sm:$0xf]
    %v551 = vld [vmem:[#allocation5 + $0xbf4] sm:$0xff]
    %v552 = vld [vmem:[#allocation5 + $0xbfc] sm:$0xff]
    %v553 = vld [vmem:[#allocation5 + $0xc04] sm:$0xf]
    %v554 = vld [vmem:[#allocation5 + $0xc08] sm:$0xff]
    %v555 = vld [vmem:[#allocation5 + $0xc10] sm:$0xff]
    %v556 = vld [vmem:[#allocation5 + $0xc18] sm:$0xf]
    %v557 = vld [vmem:[#allocation5 + $0xc1c] sm:$0xff]
    %v558 = vld [vmem:[#allocation5 + $0xc24] sm:$0xff]
    %v559 = vld [vmem:[#allocation5 + $0xc2c] sm:$0xf]
    %v560 = vld [vmem:[#allocation5 + $0xc30] sm:$0xff]
    %v561 = vld [vmem:[#allocation5 + $0xc38] sm:$0xff]
    %v562 = vld [vmem:[#allocation5 + $0xc40] sm:$0xf]
    %v563 = vld [vmem:[#allocation5 + $0xc44] sm:$0xff]
    %v564 = vld [vmem:[#allocation5 + $0xc4c] sm:$0xff]
    %v565 = vld [vmem:[#allocation5 + $0xc54] sm:$0xf]
    %v566 = vld [vmem:[#allocation5 + $0xc58] sm:$0xff]
    %v567 = vld [vmem:[#allocation5 + $0xc60] sm:$0xff]
    %v568 = vld [vmem:[#allocation5 + $0xc68] sm:$0xf]
    %v569 = vld [vmem:[#allocation5 + $0xc6c] sm:$0xff]
    %v570 = vld [vmem:[#allocation5 + $0xc74] sm:$0xff]
    %v571 = vld [vmem:[#allocation5 + $0xc7c] sm:$0xf]
    %v572 = vld [vmem:[#allocation7] sm:$0x1f]
    %v1053 = vunpack.c.l.b16 %v92
    %v1054 = vunpack.c.h.b16 %v92
    %v1055 = vunpack.c.l.b16 %v93
    %v1056 = vunpack.c.h.b16 %v93
    %v1057 = vunpack.c.l.b16 %v94
    %v1058 = vunpack.c.l.b16 %v95
    %v1059 = vunpack.c.h.b16 %v95
    %v1060 = vunpack.c.l.b16 %v96
    %v1061 = vunpack.c.h.b16 %v96
    %v1062 = vunpack.c.l.b16 %v97
    %v1063 = vunpack.c.l.b16 %v98
    %v1064 = vunpack.c.h.b16 %v98
    %v1065 = vunpack.c.l.b16 %v99
    %v1066 = vunpack.c.h.b16 %v99
    %v1067 = vunpack.c.l.b16 %v100
    %v1068 = vunpack.c.l.b16 %v101
    %v1069 = vunpack.c.h.b16 %v101
    %v1070 = vunpack.c.l.b16 %v102
    %v1071 = vunpack.c.h.b16 %v102
    %v1072 = vunpack.c.l.b16 %v103
    %v1073 = vunpack.c.l.b16 %v104
    %v1074 = vunpack.c.h.b16 %v104
    %v1075 = vunpack.c.l.b16 %v105
    %v1076 = vunpack.c.h.b16 %v105
    %v1077 = vunpack.c.l.b16 %v106
    %v1078 = vunpack.c.l.b16 %v107
    %v1079 = vunpack.c.h.b16 %v107
    %v1080 = vunpack.c.l.b16 %v108
    %v1081 = vunpack.c.h.b16 %v108
    %v1082 = vunpack.c.l.b16 %v109
    %v1083 = vunpack.c.l.b16 %v110
    %v1084 = vunpack.c.h.b16 %v110
    %v1085 = vunpack.c.l.b16 %v111
    %v1086 = vunpack.c.h.b16 %v111
    %v1087 = vunpack.c.l.b16 %v112
    %v1088 = vunpack.c.l.b16 %v113
    %v1089 = vunpack.c.h.b16 %v113
    %v1090 = vunpack.c.l.b16 %v114
    %v1091 = vunpack.c.h.b16 %v114
    %v1092 = vunpack.c.l.b16 %v115
    %v1093 = vunpack.c.l.b16 %v116
    %v1094 = vunpack.c.h.b16 %v116
    %v1095 = vunpack.c.l.b16 %v117
    %v1096 = vunpack.c.h.b16 %v117
    %v1097 = vunpack.c.l.b16 %v118
    %v1098 = vunpack.c.l.b16 %v119
    %v1099 = vunpack.c.h.b16 %v119
    %v1100 = vunpack.c.l.b16 %v120
    %v1101 = vunpack.c.h.b16 %v120
    %v1102 = vunpack.c.l.b16 %v121
    %v1103 = vunpack.c.l.b16 %v122
    %v1104 = vunpack.c.h.b16 %v122
    %v1105 = vunpack.c.l.b16 %v123
    %v1106 = vunpack.c.h.b16 %v123
    %v1107 = vunpack.c.l.b16 %v124
    %v1108 = vunpack.c.l.b16 %v125
    %v1109 = vunpack.c.h.b16 %v125
    %v1110 = vunpack.c.l.b16 %v126
    %v1111 = vunpack.c.h.b16 %v126
    %v1112 = vunpack.c.l.b16 %v127
    %v1113 = vunpack.c.l.b16 %v128
    %v1114 = vunpack.c.h.b16 %v128
    %v1115 = vunpack.c.l.b16 %v129
    %v1116 = vunpack.c.h.b16 %v129
    %v1117 = vunpack.c.l.b16 %v130
    %v1118 = vunpack.c.l.b16 %v131
    %v1119 = vunpack.c.h.b16 %v131
    %v1120 = vunpack.c.l.b16 %v132
    %v1121 = vunpack.c.h.b16 %v132
    %v1122 = vunpack.c.l.b16 %v133
    %v1123 = vunpack.c.l.b16 %v134
    %v1124 = vunpack.c.h.b16 %v134
    %v1125 = vunpack.c.l.b16 %v135
    %v1126 = vunpack.c.h.b16 %v135
    %v1127 = vunpack.c.l.b16 %v136
    %v1128 = vunpack.c.l.b16 %v137
    %v1129 = vunpack.c.h.b16 %v137
    %v1130 = vunpack.c.l.b16 %v138
    %v1131 = vunpack.c.h.b16 %v138
    %v1132 = vunpack.c.l.b16 %v139
    %v1133 = vunpack.c.l.b16 %v140
    %v1134 = vunpack.c.h.b16 %v140
    %v1135 = vunpack.c.l.b16 %v141
    %v1136 = vunpack.c.h.b16 %v141
    %v1137 = vunpack.c.l.b16 %v142
    %v1138 = vunpack.c.l.b16 %v143
    %v1139 = vunpack.c.h.b16 %v143
    %v1140 = vunpack.c.l.b16 %v144
    %v1141 = vunpack.c.h.b16 %v144
    %v1142 = vunpack.c.l.b16 %v145
    %v1143 = vunpack.c.l.b16 %v146
    %v1144 = vunpack.c.h.b16 %v146
    %v1145 = vunpack.c.l.b16 %v147
    %v1146 = vunpack.c.h.b16 %v147
    %v1147 = vunpack.c.l.b16 %v148
    %v1148 = vunpack.c.l.b16 %v149
    %v1149 = vunpack.c.h.b16 %v149
    %v1150 = vunpack.c.l.b16 %v150
    %v1151 = vunpack.c.h.b16 %v150
    %v1152 = vunpack.c.l.b16 %v151
    %v1153 = vunpack.c.l.b16 %v152
    %v1154 = vunpack.c.h.b16 %v152
    %v1155 = vunpack.c.l.b16 %v153
    %v1156 = vunpack.c.h.b16 %v153
    %v1157 = vunpack.c.l.b16 %v154
    %v1158 = vunpack.c.l.b16 %v155
    %v1159 = vunpack.c.h.b16 %v155
    %v1160 = vunpack.c.l.b16 %v156
    %v1161 = vunpack.c.h.b16 %v156
    %v1162 = vunpack.c.l.b16 %v157
    %v1163 = vunpack.c.l.b16 %v158
    %v1164 = vunpack.c.h.b16 %v158
    %v1165 = vunpack.c.l.b16 %v159
    %v1166 = vunpack.c.h.b16 %v159
    %v1167 = vunpack.c.l.b16 %v160
    %v1168 = vunpack.c.l.b16 %v161
    %v1169 = vunpack.c.h.b16 %v161
    %v1170 = vunpack.c.l.b16 %v162
    %v1171 = vunpack.c.h.b16 %v162
    %v1172 = vunpack.c.l.b16 %v163
    %v1173 = vunpack.c.l.b16 %v164
    %v1174 = vunpack.c.h.b16 %v164
    %v1175 = vunpack.c.l.b16 %v165
    %v1176 = vunpack.c.h.b16 %v165
    %v1177 = vunpack.c.l.b16 %v166
    %v1178 = vunpack.c.l.b16 %v167
    %v1179 = vunpack.c.h.b16 %v167
    %v1180 = vunpack.c.l.b16 %v168
    %v1181 = vunpack.c.h.b16 %v168
    %v1182 = vunpack.c.l.b16 %v169
    %v1183 = vunpack.c.l.b16 %v170
    %v1184 = vunpack.c.h.b16 %v170
    %v1185 = vunpack.c.l.b16 %v171
    %v1186 = vunpack.c.h.b16 %v171
    %v1187 = vunpack.c.l.b16 %v172
    %v1188 = vunpack.c.l.b16 %v173
    %v1189 = vunpack.c.h.b16 %v173
    %v1190 = vunpack.c.l.b16 %v174
    %v1191 = vunpack.c.h.b16 %v174
    %v1192 = vunpack.c.l.b16 %v175
    %v1193 = vunpack.c.l.b16 %v176
    %v1194 = vunpack.c.h.b16 %v176
    %v1195 = vunpack.c.l.b16 %v177
    %v1196 = vunpack.c.h.b16 %v177
    %v1197 = vunpack.c.l.b16 %v178
    %v1198 = vunpack.c.l.b16 %v179
    %v1199 = vunpack.c.h.b16 %v179
    %v1200 = vunpack.c.l.b16 %v180
    %v1201 = vunpack.c.h.b16 %v180
    %v1202 = vunpack.c.l.b16 %v181
    %v1203 = vunpack.c.l.b16 %v182
    %v1204 = vunpack.c.h.b16 %v182
    %v1205 = vunpack.c.l.b16 %v183
    %v1206 = vunpack.c.h.b16 %v183
    %v1207 = vunpack.c.l.b16 %v184
    %v1208 = vunpack.c.l.b16 %v185
    %v1209 = vunpack.c.h.b16 %v185
    %v1210 = vunpack.c.l.b16 %v186
    %v1211 = vunpack.c.h.b16 %v186
    %v1212 = vunpack.c.l.b16 %v187
    %v1213 = vunpack.c.l.b16 %v188
    %v1214 = vunpack.c.h.b16 %v188
    %v1215 = vunpack.c.l.b16 %v189
    %v1216 = vunpack.c.h.b16 %v189
    %v1217 = vunpack.c.l.b16 %v190
    %v1218 = vunpack.c.l.b16 %v191
    %v1219 = vunpack.c.h.b16 %v191
    %v1220 = vunpack.c.l.b16 %v192
    %v1221 = vunpack.c.h.b16 %v192
    %v1222 = vunpack.c.l.b16 %v193
    %v1223 = vunpack.c.l.b16 %v194
    %v1224 = vunpack.c.h.b16 %v194
    %v1225 = vunpack.c.l.b16 %v195
    %v1226 = vunpack.c.h.b16 %v195
    %v1227 = vunpack.c.l.b16 %v196
    %v1228 = vunpack.c.l.b16 %v197
    %v1229 = vunpack.c.h.b16 %v197
    %v1230 = vunpack.c.l.b16 %v198
    %v1231 = vunpack.c.h.b16 %v198
    %v1232 = vunpack.c.l.b16 %v199
    %v1233 = vunpack.c.l.b16 %v200
    %v1234 = vunpack.c.h.b16 %v200
    %v1235 = vunpack.c.l.b16 %v201
    %v1236 = vunpack.c.h.b16 %v201
    %v1237 = vunpack.c.l.b16 %v202
    %v1238 = vunpack.c.l.b16 %v203
    %v1239 = vunpack.c.h.b16 %v203
    %v1240 = vunpack.c.l.b16 %v204
    %v1241 = vunpack.c.h.b16 %v204
    %v1242 = vunpack.c.l.b16 %v205
    %v1243 = vunpack.c.l.b16 %v206
    %v1244 = vunpack.c.h.b16 %v206
    %v1245 = vunpack.c.l.b16 %v207
    %v1246 = vunpack.c.h.b16 %v207
    %v1247 = vunpack.c.l.b16 %v208
    %v1248 = vunpack.c.l.b16 %v209
    %v1249 = vunpack.c.h.b16 %v209
    %v1250 = vunpack.c.l.b16 %v210
    %v1251 = vunpack.c.h.b16 %v210
    %v1252 = vunpack.c.l.b16 %v211
    %v1253 = vunpack.c.l.b16 %v212
    %v1254 = vunpack.c.h.b16 %v212
    %v1255 = vunpack.c.l.b16 %v213
    %v1256 = vunpack.c.h.b16 %v213
    %v1257 = vunpack.c.l.b16 %v214
    %v1258 = vunpack.c.l.b16 %v215
    %v1259 = vunpack.c.h.b16 %v215
    %v1260 = vunpack.c.l.b16 %v216
    %v1261 = vunpack.c.h.b16 %v216
    %v1262 = vunpack.c.l.b16 %v217
    %v1263 = vunpack.c.l.b16 %v218
    %v1264 = vunpack.c.h.b16 %v218
    %v1265 = vunpack.c.l.b16 %v219
    %v1266 = vunpack.c.h.b16 %v219
    %v1267 = vunpack.c.l.b16 %v220
    %v1268 = vunpack.c.l.b16 %v221
    %v1269 = vunpack.c.h.b16 %v221
    %v1270 = vunpack.c.l.b16 %v222
    %v1271 = vunpack.c.h.b16 %v222
    %v1272 = vunpack.c.l.b16 %v223
    %v1273 = vunpack.c.l.b16 %v224
    %v1274 = vunpack.c.h.b16 %v224
    %v1275 = vunpack.c.l.b16 %v225
    %v1276 = vunpack.c.h.b16 %v225
    %v1277 = vunpack.c.l.b16 %v226
    %v1278 = vunpack.c.l.b16 %v227
    %v1279 = vunpack.c.h.b16 %v227
    %v1280 = vunpack.c.l.b16 %v228
    %v1281 = vunpack.c.h.b16 %v228
    %v1282 = vunpack.c.l.b16 %v229
    %v1283 = vunpack.c.l.b16 %v230
    %v1284 = vunpack.c.h.b16 %v230
    %v1285 = vunpack.c.l.b16 %v231
    %v1286 = vunpack.c.h.b16 %v231
    %v1287 = vunpack.c.l.b16 %v232
    %v1288 = vunpack.c.l.b16 %v233
    %v1289 = vunpack.c.h.b16 %v233
    %v1290 = vunpack.c.l.b16 %v234
    %v1291 = vunpack.c.h.b16 %v234
    %v1292 = vunpack.c.l.b16 %v235
    %v1293 = vunpack.c.l.b16 %v236
    %v1294 = vunpack.c.h.b16 %v236
    %v1295 = vunpack.c.l.b16 %v237
    %v1296 = vunpack.c.h.b16 %v237
    %v1297 = vunpack.c.l.b16 %v238
    %v1298 = vunpack.c.l.b16 %v239
    %v1299 = vunpack.c.h.b16 %v239
    %v1300 = vunpack.c.l.b16 %v240
    %v1301 = vunpack.c.h.b16 %v240
    %v1302 = vunpack.c.l.b16 %v241
    %v1303 = vunpack.c.l.b16 %v242
    %v1304 = vunpack.c.h.b16 %v242
    %v1305 = vunpack.c.l.b16 %v243
    %v1306 = vunpack.c.h.b16 %v243
    %v1307 = vunpack.c.l.b16 %v244
    %v1308 = vunpack.c.l.b16 %v245
    %v1309 = vunpack.c.h.b16 %v245
    %v1310 = vunpack.c.l.b16 %v246
    %v1311 = vunpack.c.h.b16 %v246
    %v1312 = vunpack.c.l.b16 %v247
    %v1313 = vunpack.c.l.b16 %v248
    %v1314 = vunpack.c.h.b16 %v248
    %v1315 = vunpack.c.l.b16 %v249
    %v1316 = vunpack.c.h.b16 %v249
    %v1317 = vunpack.c.l.b16 %v250
    %v1318 = vunpack.c.l.b16 %v251
    %v1319 = vunpack.c.h.b16 %v251
    %v1320 = vunpack.c.l.b16 %v252
    %v1321 = vunpack.c.h.b16 %v252
    %v1322 = vunpack.c.l.b16 %v253
    %v1323 = vunpack.c.l.b16 %v254
    %v1324 = vunpack.c.h.b16 %v254
    %v1325 = vunpack.c.l.b16 %v255
    %v1326 = vunpack.c.h.b16 %v255
    %v1327 = vunpack.c.l.b16 %v256
    %v1328 = vunpack.c.l.b16 %v257
    %v1329 = vunpack.c.h.b16 %v257
    %v1330 = vunpack.c.l.b16 %v258
    %v1331 = vunpack.c.h.b16 %v258
    %v1332 = vunpack.c.l.b16 %v259
    %v1333 = vunpack.c.l.b16 %v260
    %v1334 = vunpack.c.h.b16 %v260
    %v1335 = vunpack.c.l.b16 %v261
    %v1336 = vunpack.c.h.b16 %v261
    %v1337 = vunpack.c.l.b16 %v262
    %v1338 = vunpack.c.l.b16 %v263
    %v1339 = vunpack.c.h.b16 %v263
    %v1340 = vunpack.c.l.b16 %v264
    %v1341 = vunpack.c.h.b16 %v264
    %v1342 = vunpack.c.l.b16 %v265
    %v1343 = vunpack.c.l.b16 %v266
    %v1344 = vunpack.c.h.b16 %v266
    %v1345 = vunpack.c.l.b16 %v267
    %v1346 = vunpack.c.h.b16 %v267
    %v1347 = vunpack.c.l.b16 %v268
    %v1348 = vunpack.c.l.b16 %v269
    %v1349 = vunpack.c.h.b16 %v269
    %v1350 = vunpack.c.l.b16 %v270
    %v1351 = vunpack.c.h.b16 %v270
    %v1352 = vunpack.c.l.b16 %v271
    %v1353 = vunpack.c.l.b16 %v272
    %v1354 = vunpack.c.h.b16 %v272
    %v1355 = vunpack.c.l.b16 %v273
    %v1356 = vunpack.c.h.b16 %v273
    %v1357 = vunpack.c.l.b16 %v274
    %v1358 = vunpack.c.l.b16 %v275
    %v1359 = vunpack.c.h.b16 %v275
    %v1360 = vunpack.c.l.b16 %v276
    %v1361 = vunpack.c.h.b16 %v276
    %v1362 = vunpack.c.l.b16 %v277
    %v1363 = vunpack.c.l.b16 %v278
    %v1364 = vunpack.c.h.b16 %v278
    %v1365 = vunpack.c.l.b16 %v279
    %v1366 = vunpack.c.h.b16 %v279
    %v1367 = vunpack.c.l.b16 %v280
    %v1368 = vunpack.c.l.b16 %v281
    %v1369 = vunpack.c.h.b16 %v281
    %v1370 = vunpack.c.l.b16 %v282
    %v1371 = vunpack.c.h.b16 %v282
    %v1372 = vunpack.c.l.b16 %v283
    %v1373 = vunpack.c.l.b16 %v284
    %v1374 = vunpack.c.h.b16 %v284
    %v1375 = vunpack.c.l.b16 %v285
    %v1376 = vunpack.c.h.b16 %v285
    %v1377 = vunpack.c.l.b16 %v286
    %v1378 = vunpack.c.l.b16 %v287
    %v1379 = vunpack.c.h.b16 %v287
    %v1380 = vunpack.c.l.b16 %v288
    %v1381 = vunpack.c.h.b16 %v288
    %v1382 = vunpack.c.l.b16 %v289
    %v1383 = vunpack.c.l.b16 %v290
    %v1384 = vunpack.c.h.b16 %v290
    %v1385 = vunpack.c.l.b16 %v291
    %v1386 = vunpack.c.h.b16 %v291
    %v1387 = vunpack.c.l.b16 %v292
    %v1388 = vunpack.c.l.b16 %v293
    %v1389 = vunpack.c.h.b16 %v293
    %v1390 = vunpack.c.l.b16 %v294
    %v1391 = vunpack.c.h.b16 %v294
    %v1392 = vunpack.c.l.b16 %v295
    %v1393 = vunpack.c.l.b16 %v296
    %v1394 = vunpack.c.h.b16 %v296
    %v1395 = vunpack.c.l.b16 %v297
    %v1396 = vunpack.c.h.b16 %v297
    %v1397 = vunpack.c.l.b16 %v298
    %v1398 = vunpack.c.l.b16 %v299
    %v1399 = vunpack.c.h.b16 %v299
    %v1400 = vunpack.c.l.b16 %v300
    %v1401 = vunpack.c.h.b16 %v300
    %v1402 = vunpack.c.l.b16 %v301
    %v1403 = vunpack.c.l.b16 %v302
    %v1404 = vunpack.c.h.b16 %v302
    %v1405 = vunpack.c.l.b16 %v303
    %v1406 = vunpack.c.h.b16 %v303
    %v1407 = vunpack.c.l.b16 %v304
    %v1408 = vunpack.c.l.b16 %v305
    %v1409 = vunpack.c.h.b16 %v305
    %v1410 = vunpack.c.l.b16 %v306
    %v1411 = vunpack.c.h.b16 %v306
    %v1412 = vunpack.c.l.b16 %v307
    %v1413 = vunpack.c.l.b16 %v308
    %v1414 = vunpack.c.h.b16 %v308
    %v1415 = vunpack.c.l.b16 %v309
    %v1416 = vunpack.c.h.b16 %v309
    %v1417 = vunpack.c.l.b16 %v310
    %v1418 = vunpack.c.l.b16 %v311
    %v1419 = vunpack.c.h.b16 %v311
    %v1420 = vunpack.c.l.b16 %v312
    %v1421 = vunpack.c.h.b16 %v312
    %v1422 = vunpack.c.l.b16 %v313
    %v1423 = vunpack.c.l.b16 %v314
    %v1424 = vunpack.c.h.b16 %v314
    %v1425 = vunpack.c.l.b16 %v315
    %v1426 = vunpack.c.h.b16 %v315
    %v1427 = vunpack.c.l.b16 %v316
    %v1428 = vunpack.c.l.b16 %v317
    %v1429 = vunpack.c.h.b16 %v317
    %v1430 = vunpack.c.l.b16 %v318
    %v1431 = vunpack.c.h.b16 %v318
    %v1432 = vunpack.c.l.b16 %v319
    %v1433 = vunpack.c.l.b16 %v320
    %v1434 = vunpack.c.h.b16 %v320
    %v1435 = vunpack.c.l.b16 %v321
    %v1436 = vunpack.c.h.b16 %v321
    %v1437 = vunpack.c.l.b16 %v322
    %v1438 = vunpack.c.l.b16 %v323
    %v1439 = vunpack.c.h.b16 %v323
    %v1440 = vunpack.c.l.b16 %v324
    %v1441 = vunpack.c.h.b16 %v324
    %v1442 = vunpack.c.l.b16 %v325
    %v1443 = vunpack.c.l.b16 %v326
    %v1444 = vunpack.c.h.b16 %v326
    %v1445 = vunpack.c.l.b16 %v327
    %v1446 = vunpack.c.h.b16 %v327
    %v1447 = vunpack.c.l.b16 %v328
    %v1448 = vunpack.c.l.b16 %v329
    %v1449 = vunpack.c.h.b16 %v329
    %v1450 = vunpack.c.l.b16 %v330
    %v1451 = vunpack.c.h.b16 %v330
    %v1452 = vunpack.c.l.b16 %v331
    %v1453 = vunpack.c.l.b16 %v332
    %v1454 = vunpack.c.h.b16 %v332
    %v1455 = vunpack.c.l.b16 %v333
    %v1456 = vunpack.c.h.b16 %v333
    %v1457 = vunpack.c.l.b16 %v334
    %v1458 = vunpack.c.l.b16 %v335
    %v1459 = vunpack.c.h.b16 %v335
    %v1460 = vunpack.c.l.b16 %v336
    %v1461 = vunpack.c.h.b16 %v336
    %v1462 = vunpack.c.l.b16 %v337
    %v1463 = vunpack.c.l.b16 %v338
    %v1464 = vunpack.c.h.b16 %v338
    %v1465 = vunpack.c.l.b16 %v339
    %v1466 = vunpack.c.h.b16 %v339
    %v1467 = vunpack.c.l.b16 %v340
    %v1468 = vunpack.c.l.b16 %v341
    %v1469 = vunpack.c.h.b16 %v341
    %v1470 = vunpack.c.l.b16 %v342
    %v1471 = vunpack.c.h.b16 %v342
    %v1472 = vunpack.c.l.b16 %v343
    %v1473 = vunpack.c.l.b16 %v344
    %v1474 = vunpack.c.h.b16 %v344
    %v1475 = vunpack.c.l.b16 %v345
    %v1476 = vunpack.c.h.b16 %v345
    %v1477 = vunpack.c.l.b16 %v346
    %v1478 = vunpack.c.l.b16 %v347
    %v1479 = vunpack.c.h.b16 %v347
    %v1480 = vunpack.c.l.b16 %v348
    %v1481 = vunpack.c.h.b16 %v348
    %v1482 = vunpack.c.l.b16 %v349
    %v1483 = vunpack.c.l.b16 %v350
    %v1484 = vunpack.c.h.b16 %v350
    %v1485 = vunpack.c.l.b16 %v351
    %v1486 = vunpack.c.h.b16 %v351
    %v1487 = vunpack.c.l.b16 %v352
    %v1488 = vunpack.c.l.b16 %v353
    %v1489 = vunpack.c.h.b16 %v353
    %v1490 = vunpack.c.l.b16 %v354
    %v1491 = vunpack.c.h.b16 %v354
    %v1492 = vunpack.c.l.b16 %v355
    %v1493 = vunpack.c.l.b16 %v356
    %v1494 = vunpack.c.h.b16 %v356
    %v1495 = vunpack.c.l.b16 %v357
    %v1496 = vunpack.c.h.b16 %v357
    %v1497 = vunpack.c.l.b16 %v358
    %v1498 = vunpack.c.l.b16 %v359
    %v1499 = vunpack.c.h.b16 %v359
    %v1500 = vunpack.c.l.b16 %v360
    %v1501 = vunpack.c.h.b16 %v360
    %v1502 = vunpack.c.l.b16 %v361
    %v1503 = vunpack.c.l.b16 %v362
    %v1504 = vunpack.c.h.b16 %v362
    %v1505 = vunpack.c.l.b16 %v363
    %v1506 = vunpack.c.h.b16 %v363
    %v1507 = vunpack.c.l.b16 %v364
    %v1508 = vunpack.c.l.b16 %v365
    %v1509 = vunpack.c.h.b16 %v365
    %v1510 = vunpack.c.l.b16 %v366
    %v1511 = vunpack.c.h.b16 %v366
    %v1512 = vunpack.c.l.b16 %v367
    %v1513 = vunpack.c.l.b16 %v368
    %v1514 = vunpack.c.h.b16 %v368
    %v1515 = vunpack.c.l.b16 %v369
    %v1516 = vunpack.c.h.b16 %v369
    %v1517 = vunpack.c.l.b16 %v370
    %v1518 = vunpack.c.l.b16 %v371
    %v1519 = vunpack.c.h.b16 %v371
    %v1520 = vunpack.c.l.b16 %v372
    %v1521 = vunpack.c.h.b16 %v372
    %v1522 = vunpack.c.l.b16 %v373
    %v1523 = vunpack.c.l.b16 %v374
    %v1524 = vunpack.c.h.b16 %v374
    %v1525 = vunpack.c.l.b16 %v375
    %v1526 = vunpack.c.h.b16 %v375
    %v1527 = vunpack.c.l.b16 %v376
    %v1528 = vunpack.c.l.b16 %v377
    %v1529 = vunpack.c.h.b16 %v377
    %v1530 = vunpack.c.l.b16 %v378
    %v1531 = vunpack.c.h.b16 %v378
    %v1532 = vunpack.c.l.b16 %v379
    %v1533 = vunpack.c.l.b16 %v380
    %v1534 = vunpack.c.h.b16 %v380
    %v1535 = vunpack.c.l.b16 %v381
    %v1536 = vunpack.c.h.b16 %v381
    %v1537 = vunpack.c.l.b16 %v382
    %v1538 = vunpack.c.l.b16 %v383
    %v1539 = vunpack.c.h.b16 %v383
    %v1540 = vunpack.c.l.b16 %v384
    %v1541 = vunpack.c.h.b16 %v384
    %v1542 = vunpack.c.l.b16 %v385
    %v1543 = vunpack.c.l.b16 %v386
    %v1544 = vunpack.c.h.b16 %v386
    %v1545 = vunpack.c.l.b16 %v387
    %v1546 = vunpack.c.h.b16 %v387
    %v1547 = vunpack.c.l.b16 %v388
    %v1548 = vunpack.c.l.b16 %v389
    %v1549 = vunpack.c.h.b16 %v389
    %v1550 = vunpack.c.l.b16 %v390
    %v1551 = vunpack.c.h.b16 %v390
    %v1552 = vunpack.c.l.b16 %v391
    %v1553 = vunpack.c.l.b16 %v392
    %v1554 = vunpack.c.h.b16 %v392
    %v1555 = vunpack.c.l.b16 %v393
    %v1556 = vunpack.c.h.b16 %v393
    %v1557 = vunpack.c.l.b16 %v394
    %v1558 = vunpack.c.l.b16 %v395
    %v1559 = vunpack.c.h.b16 %v395
    %v1560 = vunpack.c.l.b16 %v396
    %v1561 = vunpack.c.h.b16 %v396
    %v1562 = vunpack.c.l.b16 %v397
    %v1563 = vunpack.c.l.b16 %v398
    %v1564 = vunpack.c.h.b16 %v398
    %v1565 = vunpack.c.l.b16 %v399
    %v1566 = vunpack.c.h.b16 %v399
    %v1567 = vunpack.c.l.b16 %v400
    %v1568 = vunpack.c.l.b16 %v401
    %v1569 = vunpack.c.h.b16 %v401
    %v1570 = vunpack.c.l.b16 %v402
    %v1571 = vunpack.c.h.b16 %v402
    %v1572 = vunpack.c.l.b16 %v403
    %v1573 = vunpack.c.l.b16 %v404
    %v1574 = vunpack.c.h.b16 %v404
    %v1575 = vunpack.c.l.b16 %v405
    %v1576 = vunpack.c.h.b16 %v405
    %v1577 = vunpack.c.l.b16 %v406
    %v1578 = vunpack.c.l.b16 %v407
    %v1579 = vunpack.c.h.b16 %v407
    %v1580 = vunpack.c.l.b16 %v408
    %v1581 = vunpack.c.h.b16 %v408
    %v1582 = vunpack.c.l.b16 %v409
    %v1583 = vunpack.c.l.b16 %v410
    %v1584 = vunpack.c.h.b16 %v410
    %v1585 = vunpack.c.l.b16 %v411
    %v1586 = vunpack.c.h.b16 %v411
    %v1587 = vunpack.c.l.b16 %v412
    %v1588 = vunpack.c.l.b16 %v413
    %v1589 = vunpack.c.h.b16 %v413
    %v1590 = vunpack.c.l.b16 %v414
    %v1591 = vunpack.c.h.b16 %v414
    %v1592 = vunpack.c.l.b16 %v415
    %v1593 = vunpack.c.l.b16 %v416
    %v1594 = vunpack.c.h.b16 %v416
    %v1595 = vunpack.c.l.b16 %v417
    %v1596 = vunpack.c.h.b16 %v417
    %v1597 = vunpack.c.l.b16 %v418
    %v1598 = vunpack.c.l.b16 %v419
    %v1599 = vunpack.c.h.b16 %v419
    %v1600 = vunpack.c.l.b16 %v420
    %v1601 = vunpack.c.h.b16 %v420
    %v1602 = vunpack.c.l.b16 %v421
    %v1603 = vunpack.c.l.b16 %v422
    %v1604 = vunpack.c.h.b16 %v422
    %v1605 = vunpack.c.l.b16 %v423
    %v1606 = vunpack.c.h.b16 %v423
    %v1607 = vunpack.c.l.b16 %v424
    %v1608 = vunpack.c.l.b16 %v425
    %v1609 = vunpack.c.h.b16 %v425
    %v1610 = vunpack.c.l.b16 %v426
    %v1611 = vunpack.c.h.b16 %v426
    %v1612 = vunpack.c.l.b16 %v427
    %v1613 = vunpack.c.l.b16 %v428
    %v1614 = vunpack.c.h.b16 %v428
    %v1615 = vunpack.c.l.b16 %v429
    %v1616 = vunpack.c.h.b16 %v429
    %v1617 = vunpack.c.l.b16 %v430
    %v1618 = vunpack.c.l.b16 %v431
    %v1619 = vunpack.c.h.b16 %v431
    %v1620 = vunpack.c.l.b16 %v432
    %v1621 = vunpack.c.h.b16 %v432
    %v1622 = vunpack.c.l.b16 %v433
    %v1623 = vunpack.c.l.b16 %v434
    %v1624 = vunpack.c.h.b16 %v434
    %v1625 = vunpack.c.l.b16 %v435
    %v1626 = vunpack.c.h.b16 %v435
    %v1627 = vunpack.c.l.b16 %v436
    %v1628 = vunpack.c.l.b16 %v437
    %v1629 = vunpack.c.h.b16 %v437
    %v1630 = vunpack.c.l.b16 %v438
    %v1631 = vunpack.c.h.b16 %v438
    %v1632 = vunpack.c.l.b16 %v439
    %v1633 = vunpack.c.l.b16 %v440
    %v1634 = vunpack.c.h.b16 %v440
    %v1635 = vunpack.c.l.b16 %v441
    %v1636 = vunpack.c.h.b16 %v441
    %v1637 = vunpack.c.l.b16 %v442
    %v1638 = vunpack.c.l.b16 %v443
    %v1639 = vunpack.c.h.b16 %v443
    %v1640 = vunpack.c.l.b16 %v444
    %v1641 = vunpack.c.h.b16 %v444
    %v1642 = vunpack.c.l.b16 %v445
    %v1643 = vunpack.c.l.b16 %v446
    %v1644 = vunpack.c.h.b16 %v446
    %v1645 = vunpack.c.l.b16 %v447
    %v1646 = vunpack.c.h.b16 %v447
    %v1647 = vunpack.c.l.b16 %v448
    %v1648 = vunpack.c.l.b16 %v449
    %v1649 = vunpack.c.h.b16 %v449
    %v1650 = vunpack.c.l.b16 %v450
    %v1651 = vunpack.c.h.b16 %v450
    %v1652 = vunpack.c.l.b16 %v451
    %v1653 = vunpack.c.l.b16 %v452
    %v1654 = vunpack.c.h.b16 %v452
    %v1655 = vunpack.c.l.b16 %v453
    %v1656 = vunpack.c.h.b16 %v453
    %v1657 = vunpack.c.l.b16 %v454
    %v1658 = vunpack.c.l.b16 %v455
    %v1659 = vunpack.c.h.b16 %v455
    %v1660 = vunpack.c.l.b16 %v456
    %v1661 = vunpack.c.h.b16 %v456
    %v1662 = vunpack.c.l.b16 %v457
    %v1663 = vunpack.c.l.b16 %v458
    %v1664 = vunpack.c.h.b16 %v458
    %v1665 = vunpack.c.l.b16 %v459
    %v1666 = vunpack.c.h.b16 %v459
    %v1667 = vunpack.c.l.b16 %v460
    %v1668 = vunpack.c.l.b16 %v461
    %v1669 = vunpack.c.h.b16 %v461
    %v1670 = vunpack.c.l.b16 %v462
    %v1671 = vunpack.c.h.b16 %v462
    %v1672 = vunpack.c.l.b16 %v463
    %v1673 = vunpack.c.l.b16 %v464
    %v1674 = vunpack.c.h.b16 %v464
    %v1675 = vunpack.c.l.b16 %v465
    %v1676 = vunpack.c.h.b16 %v465
    %v1677 = vunpack.c.l.b16 %v466
    %v1678 = vunpack.c.l.b16 %v467
    %v1679 = vunpack.c.h.b16 %v467
    %v1680 = vunpack.c.l.b16 %v468
    %v1681 = vunpack.c.h.b16 %v468
    %v1682 = vunpack.c.l.b16 %v469
    %v1683 = vunpack.c.l.b16 %v470
    %v1684 = vunpack.c.h.b16 %v470
    %v1685 = vunpack.c.l.b16 %v471
    %v1686 = vunpack.c.h.b16 %v471
    %v1687 = vunpack.c.l.b16 %v472
    %v1688 = vunpack.c.l.b16 %v473
    %v1689 = vunpack.c.h.b16 %v473
    %v1690 = vunpack.c.l.b16 %v474
    %v1691 = vunpack.c.h.b16 %v474
    %v1692 = vunpack.c.l.b16 %v475
    %v1693 = vunpack.c.l.b16 %v476
    %v1694 = vunpack.c.h.b16 %v476
    %v1695 = vunpack.c.l.b16 %v477
    %v1696 = vunpack.c.h.b16 %v477
    %v1697 = vunpack.c.l.b16 %v478
    %v1698 = vunpack.c.l.b16 %v479
    %v1699 = vunpack.c.h.b16 %v479
    %v1700 = vunpack.c.l.b16 %v480
    %v1701 = vunpack.c.h.b16 %v480
    %v1702 = vunpack.c.l.b16 %v481
    %v1703 = vunpack.c.l.b16 %v482
    %v1704 = vunpack.c.h.b16 %v482
    %v1705 = vunpack.c.l.b16 %v483
    %v1706 = vunpack.c.h.b16 %v483
    %v1707 = vunpack.c.l.b16 %v484
    %v1708 = vunpack.c.l.b16 %v485
    %v1709 = vunpack.c.h.b16 %v485
    %v1710 = vunpack.c.l.b16 %v486
    %v1711 = vunpack.c.h.b16 %v486
    %v1712 = vunpack.c.l.b16 %v487
    %v1713 = vunpack.c.l.b16 %v488
    %v1714 = vunpack.c.h.b16 %v488
    %v1715 = vunpack.c.l.b16 %v489
    %v1716 = vunpack.c.h.b16 %v489
    %v1717 = vunpack.c.l.b16 %v490
    %v1718 = vunpack.c.l.b16 %v491
    %v1719 = vunpack.c.h.b16 %v491
    %v1720 = vunpack.c.l.b16 %v492
    %v1721 = vunpack.c.h.b16 %v492
    %v1722 = vunpack.c.l.b16 %v493
    %v1723 = vunpack.c.l.b16 %v494
    %v1724 = vunpack.c.h.b16 %v494
    %v1725 = vunpack.c.l.b16 %v495
    %v1726 = vunpack.c.h.b16 %v495
    %v1727 = vunpack.c.l.b16 %v496
    %v1728 = vunpack.c.l.b16 %v497
    %v1729 = vunpack.c.h.b16 %v497
    %v1730 = vunpack.c.l.b16 %v498
    %v1731 = vunpack.c.h.b16 %v498
    %v1732 = vunpack.c.l.b16 %v499
    %v1733 = vunpack.c.l.b16 %v500
    %v1734 = vunpack.c.h.b16 %v500
    %v1735 = vunpack.c.l.b16 %v501
    %v1736 = vunpack.c.h.b16 %v501
    %v1737 = vunpack.c.l.b16 %v502
    %v1738 = vunpack.c.l.b16 %v503
    %v1739 = vunpack.c.h.b16 %v503
    %v1740 = vunpack.c.l.b16 %v504
    %v1741 = vunpack.c.h.b16 %v504
    %v1742 = vunpack.c.l.b16 %v505
    %v1743 = vunpack.c.l.b16 %v506
    %v1744 = vunpack.c.h.b16 %v506
    %v1745 = vunpack.c.l.b16 %v507
    %v1746 = vunpack.c.h.b16 %v507
    %v1747 = vunpack.c.l.b16 %v508
    %v1748 = vunpack.c.l.b16 %v509
    %v1749 = vunpack.c.h.b16 %v509
    %v1750 = vunpack.c.l.b16 %v510
    %v1751 = vunpack.c.h.b16 %v510
    %v1752 = vunpack.c.l.b16 %v511
    %v1753 = vunpack.c.l.b16 %v512
    %v1754 = vunpack.c.h.b16 %v512
    %v1755 = vunpack.c.l.b16 %v513
    %v1756 = vunpack.c.h.b16 %v513
    %v1757 = vunpack.c.l.b16 %v514
    %v1758 = vunpack.c.l.b16 %v515
    %v1759 = vunpack.c.h.b16 %v515
    %v1760 = vunpack.c.l.b16 %v516
    %v1761 = vunpack.c.h.b16 %v516
    %v1762 = vunpack.c.l.b16 %v517
    %v1763 = vunpack.c.l.b16 %v518
    %v1764 = vunpack.c.h.b16 %v518
    %v1765 = vunpack.c.l.b16 %v519
    %v1766 = vunpack.c.h.b16 %v519
    %v1767 = vunpack.c.l.b16 %v520
    %v1768 = vunpack.c.l.b16 %v521
    %v1769 = vunpack.c.h.b16 %v521
    %v1770 = vunpack.c.l.b16 %v522
    %v1771 = vunpack.c.h.b16 %v522
    %v1772 = vunpack.c.l.b16 %v523
    %v1773 = vunpack.c.l.b16 %v524
    %v1774 = vunpack.c.h.b16 %v524
    %v1775 = vunpack.c.l.b16 %v525
    %v1776 = vunpack.c.h.b16 %v525
    %v1777 = vunpack.c.l.b16 %v526
    %v1778 = vunpack.c.l.b16 %v527
    %v1779 = vunpack.c.h.b16 %v527
    %v1780 = vunpack.c.l.b16 %v528
    %v1781 = vunpack.c.h.b16 %v528
    %v1782 = vunpack.c.l.b16 %v529
    %v1783 = vunpack.c.l.b16 %v530
    %v1784 = vunpack.c.h.b16 %v530
    %v1785 = vunpack.c.l.b16 %v531
    %v1786 = vunpack.c.h.b16 %v531
    %v1787 = vunpack.c.l.b16 %v532
    %v1788 = vunpack.c.l.b16 %v533
    %v1789 = vunpack.c.h.b16 %v533
    %v1790 = vunpack.c.l.b16 %v534
    %v1791 = vunpack.c.h.b16 %v534
    %v1792 = vunpack.c.l.b16 %v535
    %v1793 = vunpack.c.l.b16 %v536
    %v1794 = vunpack.c.h.b16 %v536
    %v1795 = vunpack.c.l.b16 %v537
    %v1796 = vunpack.c.h.b16 %v537
    %v1797 = vunpack.c.l.b16 %v538
    %v1798 = vunpack.c.l.b16 %v539
    %v1799 = vunpack.c.h.b16 %v539
    %v1800 = vunpack.c.l.b16 %v540
    %v1801 = vunpack.c.h.b16 %v540
    %v1802 = vunpack.c.l.b16 %v541
    %v1803 = vunpack.c.l.b16 %v542
    %v1804 = vunpack.c.h.b16 %v542
    %v1805 = vunpack.c.l.b16 %v543
    %v1806 = vunpack.c.h.b16 %v543
    %v1807 = vunpack.c.l.b16 %v544
    %v1808 = vunpack.c.l.b16 %v545
    %v1809 = vunpack.c.h.b16 %v545
    %v1810 = vunpack.c.l.b16 %v546
    %v1811 = vunpack.c.h.b16 %v546
    %v1812 = vunpack.c.l.b16 %v547
    %v1813 = vunpack.c.l.b16 %v548
    %v1814 = vunpack.c.h.b16 %v548
    %v1815 = vunpack.c.l.b16 %v549
    %v1816 = vunpack.c.h.b16 %v549
    %v1817 = vunpack.c.l.b16 %v550
    %v1818 = vunpack.c.l.b16 %v551
    %v1819 = vunpack.c.h.b16 %v551
    %v1820 = vunpack.c.l.b16 %v552
    %v1821 = vunpack.c.h.b16 %v552
    %v1822 = vunpack.c.l.b16 %v553
    %v1823 = vunpack.c.l.b16 %v554
    %v1824 = vunpack.c.h.b16 %v554
    %v1825 = vunpack.c.l.b16 %v555
    %v1826 = vunpack.c.h.b16 %v555
    %v1827 = vunpack.c.l.b16 %v556
    %v1828 = vunpack.c.l.b16 %v557
    %v1829 = vunpack.c.h.b16 %v557
    %v1830 = vunpack.c.l.b16 %v558
    %v1831 = vunpack.c.h.b16 %v558
    %v1832 = vunpack.c.l.b16 %v559
    %v1833 = vunpack.c.l.b16 %v560
    %v1834 = vunpack.c.h.b16 %v560
    %v1835 = vunpack.c.l.b16 %v561
    %v1836 = vunpack.c.h.b16 %v561
    %v1837 = vunpack.c.l.b16 %v562
    %v1838 = vunpack.c.l.b16 %v563
    %v1839 = vunpack.c.h.b16 %v563
    %v1840 = vunpack.c.l.b16 %v564
    %v1841 = vunpack.c.h.b16 %v564
    %v1842 = vunpack.c.l.b16 %v565
    %v1843 = vunpack.c.l.b16 %v566
    %v1844 = vunpack.c.h.b16 %v566
    %v1845 = vunpack.c.l.b16 %v567
    %v1846 = vunpack.c.h.b16 %v567
    %v1847 = vunpack.c.l.b16 %v568
    %v1848 = vunpack.c.l.b16 %v569
    %v1849 = vunpack.c.h.b16 %v569
    %v1850 = vunpack.c.l.b16 %v570
    %v1851 = vunpack.c.h.b16 %v570
    %v1852 = vunpack.c.l.b16 %v571
    %v1853 = vpack.c.b16 %v1058, %v1053
    %v1854 = vpack.c.b16 %v1059, %v1054
    %v1855 = vpack.c.b16 %v1060, %v1055
    %v1856 = vpack.c.b16 %v1061, %v1056
    %v1857 = vpack.c.b16 %v1062, %v1057
    %v1858 = vpack.c.b16 %v1068, %v1063
    %v1859 = vpack.c.b16 %v1069, %v1064
    %v1860 = vpack.c.b16 %v1070, %v1065
    %v1861 = vpack.c.b16 %v1071, %v1066
    %v1862 = vpack.c.b16 %v1072, %v1067
    %v1863 = vpack.c.b16 %v1078, %v1073
    %v1864 = vpack.c.b16 %v1079, %v1074
    %v1865 = vpack.c.b16 %v1080, %v1075
    %v1866 = vpack.c.b16 %v1081, %v1076
    %v1867 = vpack.c.b16 %v1082, %v1077
    %v1868 = vpack.c.b16 %v1088, %v1083
    %v1869 = vpack.c.b16 %v1089, %v1084
    %v1870 = vpack.c.b16 %v1090, %v1085
    %v1871 = vpack.c.b16 %v1091, %v1086
    %v1872 = vpack.c.b16 %v1092, %v1087
    %v1873 = vpack.c.b16 %v1098, %v1093
    %v1874 = vpack.c.b16 %v1099, %v1094
    %v1875 = vpack.c.b16 %v1100, %v1095
    %v1876 = vpack.c.b16 %v1101, %v1096
    %v1877 = vpack.c.b16 %v1102, %v1097
    %v1878 = vpack.c.b16 %v1108, %v1103
    %v1879 = vpack.c.b16 %v1109, %v1104
    %v1880 = vpack.c.b16 %v1110, %v1105
    %v1881 = vpack.c.b16 %v1111, %v1106
    %v1882 = vpack.c.b16 %v1112, %v1107
    %v1883 = vpack.c.b16 %v1118, %v1113
    %v1884 = vpack.c.b16 %v1119, %v1114
    %v1885 = vpack.c.b16 %v1120, %v1115
    %v1886 = vpack.c.b16 %v1121, %v1116
    %v1887 = vpack.c.b16 %v1122, %v1117
    %v1888 = vpack.c.b16 %v1128, %v1123
    %v1889 = vpack.c.b16 %v1129, %v1124
    %v1890 = vpack.c.b16 %v1130, %v1125
    %v1891 = vpack.c.b16 %v1131, %v1126
    %v1892 = vpack.c.b16 %v1132, %v1127
    %v1893 = vpack.c.b16 %v1138, %v1133
    %v1894 = vpack.c.b16 %v1139, %v1134
    %v1895 = vpack.c.b16 %v1140, %v1135
    %v1896 = vpack.c.b16 %v1141, %v1136
    %v1897 = vpack.c.b16 %v1142, %v1137
    %v1898 = vpack.c.b16 %v1148, %v1143
    %v1899 = vpack.c.b16 %v1149, %v1144
    %v1900 = vpack.c.b16 %v1150, %v1145
    %v1901 = vpack.c.b16 %v1151, %v1146
    %v1902 = vpack.c.b16 %v1152, %v1147
    %v1903 = vpack.c.b16 %v1158, %v1153
    %v1904 = vpack.c.b16 %v1159, %v1154
    %v1905 = vpack.c.b16 %v1160, %v1155
    %v1906 = vpack.c.b16 %v1161, %v1156
    %v1907 = vpack.c.b16 %v1162, %v1157
    %v1908 = vpack.c.b16 %v1168, %v1163
    %v1909 = vpack.c.b16 %v1169, %v1164
    %v1910 = vpack.c.b16 %v1170, %v1165
    %v1911 = vpack.c.b16 %v1171, %v1166
    %v1912 = vpack.c.b16 %v1172, %v1167
    %v1913 = vpack.c.b16 %v1178, %v1173
    %v1914 = vpack.c.b16 %v1179, %v1174
    %v1915 = vpack.c.b16 %v1180, %v1175
    %v1916 = vpack.c.b16 %v1181, %v1176
    %v1917 = vpack.c.b16 %v1182, %v1177
    %v1918 = vpack.c.b16 %v1188, %v1183
    %v1919 = vpack.c.b16 %v1189, %v1184
    %v1920 = vpack.c.b16 %v1190, %v1185
    %v1921 = vpack.c.b16 %v1191, %v1186
    %v1922 = vpack.c.b16 %v1192, %v1187
    %v1923 = vpack.c.b16 %v1198, %v1193
    %v1924 = vpack.c.b16 %v1199, %v1194
    %v1925 = vpack.c.b16 %v1200, %v1195
    %v1926 = vpack.c.b16 %v1201, %v1196
    %v1927 = vpack.c.b16 %v1202, %v1197
    %v1928 = vpack.c.b16 %v1208, %v1203
    %v1929 = vpack.c.b16 %v1209, %v1204
    %v1930 = vpack.c.b16 %v1210, %v1205
    %v1931 = vpack.c.b16 %v1211, %v1206
    %v1932 = vpack.c.b16 %v1212, %v1207
    %v1933 = vpack.c.b16 %v1218, %v1213
    %v1934 = vpack.c.b16 %v1219, %v1214
    %v1935 = vpack.c.b16 %v1220, %v1215
    %v1936 = vpack.c.b16 %v1221, %v1216
    %v1937 = vpack.c.b16 %v1222, %v1217
    %v1938 = vpack.c.b16 %v1228, %v1223
    %v1939 = vpack.c.b16 %v1229, %v1224
    %v1940 = vpack.c.b16 %v1230, %v1225
    %v1941 = vpack.c.b16 %v1231, %v1226
    %v1942 = vpack.c.b16 %v1232, %v1227
    %v1943 = vpack.c.b16 %v1238, %v1233
    %v1944 = vpack.c.b16 %v1239, %v1234
    %v1945 = vpack.c.b16 %v1240, %v1235
    %v1946 = vpack.c.b16 %v1241, %v1236
    %v1947 = vpack.c.b16 %v1242, %v1237
    %v1948 = vpack.c.b16 %v1248, %v1243
    %v1949 = vpack.c.b16 %v1249, %v1244
    %v1950 = vpack.c.b16 %v1250, %v1245
    %v1951 = vpack.c.b16 %v1251, %v1246
    %v1952 = vpack.c.b16 %v1252, %v1247
    %v1953 = vpack.c.b16 %v1258, %v1253
    %v1954 = vpack.c.b16 %v1259, %v1254
    %v1955 = vpack.c.b16 %v1260, %v1255
    %v1956 = vpack.c.b16 %v1261, %v1256
    %v1957 = vpack.c.b16 %v1262, %v1257
    %v1958 = vpack.c.b16 %v1268, %v1263
    %v1959 = vpack.c.b16 %v1269, %v1264
    %v1960 = vpack.c.b16 %v1270, %v1265
    %v1961 = vpack.c.b16 %v1271, %v1266
    %v1962 = vpack.c.b16 %v1272, %v1267
    %v1963 = vpack.c.b16 %v1278, %v1273
    %v1964 = vpack.c.b16 %v1279, %v1274
    %v1965 = vpack.c.b16 %v1280, %v1275
    %v1966 = vpack.c.b16 %v1281, %v1276
    %v1967 = vpack.c.b16 %v1282, %v1277
    %v1968 = vpack.c.b16 %v1288, %v1283
    %v1969 = vpack.c.b16 %v1289, %v1284
    %v1970 = vpack.c.b16 %v1290, %v1285
    %v1971 = vpack.c.b16 %v1291, %v1286
    %v1972 = vpack.c.b16 %v1292, %v1287
    %v1973 = vpack.c.b16 %v1298, %v1293
    %v1974 = vpack.c.b16 %v1299, %v1294
    %v1975 = vpack.c.b16 %v1300, %v1295
    %v1976 = vpack.c.b16 %v1301, %v1296
    %v1977 = vpack.c.b16 %v1302, %v1297
    %v1978 = vpack.c.b16 %v1308, %v1303
    %v1979 = vpack.c.b16 %v1309, %v1304
    %v1980 = vpack.c.b16 %v1310, %v1305
    %v1981 = vpack.c.b16 %v1311, %v1306
    %v1982 = vpack.c.b16 %v1312, %v1307
    %v1983 = vpack.c.b16 %v1318, %v1313
    %v1984 = vpack.c.b16 %v1319, %v1314
    %v1985 = vpack.c.b16 %v1320, %v1315
    %v1986 = vpack.c.b16 %v1321, %v1316
    %v1987 = vpack.c.b16 %v1322, %v1317
    %v1988 = vpack.c.b16 %v1328, %v1323
    %v1989 = vpack.c.b16 %v1329, %v1324
    %v1990 = vpack.c.b16 %v1330, %v1325
    %v1991 = vpack.c.b16 %v1331, %v1326
    %v1992 = vpack.c.b16 %v1332, %v1327
    %v1993 = vpack.c.b16 %v1338, %v1333
    %v1994 = vpack.c.b16 %v1339, %v1334
    %v1995 = vpack.c.b16 %v1340, %v1335
    %v1996 = vpack.c.b16 %v1341, %v1336
    %v1997 = vpack.c.b16 %v1342, %v1337
    %v1998 = vpack.c.b16 %v1348, %v1343
    %v1999 = vpack.c.b16 %v1349, %v1344
    %v2000 = vpack.c.b16 %v1350, %v1345
    %v2001 = vpack.c.b16 %v1351, %v1346
    %v2002 = vpack.c.b16 %v1352, %v1347
    %v2003 = vpack.c.b16 %v1358, %v1353
    %v2004 = vpack.c.b16 %v1359, %v1354
    %v2005 = vpack.c.b16 %v1360, %v1355
    %v2006 = vpack.c.b16 %v1361, %v1356
    %v2007 = vpack.c.b16 %v1362, %v1357
    %v2008 = vpack.c.b16 %v1368, %v1363
    %v2009 = vpack.c.b16 %v1369, %v1364
    %v2010 = vpack.c.b16 %v1370, %v1365
    %v2011 = vpack.c.b16 %v1371, %v1366
    %v2012 = vpack.c.b16 %v1372, %v1367
    %v2013 = vpack.c.b16 %v1378, %v1373
    %v2014 = vpack.c.b16 %v1379, %v1374
    %v2015 = vpack.c.b16 %v1380, %v1375
    %v2016 = vpack.c.b16 %v1381, %v1376
    %v2017 = vpack.c.b16 %v1382, %v1377
    %v2018 = vpack.c.b16 %v1388, %v1383
    %v2019 = vpack.c.b16 %v1389, %v1384
    %v2020 = vpack.c.b16 %v1390, %v1385
    %v2021 = vpack.c.b16 %v1391, %v1386
    %v2022 = vpack.c.b16 %v1392, %v1387
    %v2023 = vpack.c.b16 %v1398, %v1393
    %v2024 = vpack.c.b16 %v1399, %v1394
    %v2025 = vpack.c.b16 %v1400, %v1395
    %v2026 = vpack.c.b16 %v1401, %v1396
    %v2027 = vpack.c.b16 %v1402, %v1397
    %v2028 = vpack.c.b16 %v1408, %v1403
    %v2029 = vpack.c.b16 %v1409, %v1404
    %v2030 = vpack.c.b16 %v1410, %v1405
    %v2031 = vpack.c.b16 %v1411, %v1406
    %v2032 = vpack.c.b16 %v1412, %v1407
    %v2033 = vpack.c.b16 %v1418, %v1413
    %v2034 = vpack.c.b16 %v1419, %v1414
    %v2035 = vpack.c.b16 %v1420, %v1415
    %v2036 = vpack.c.b16 %v1421, %v1416
    %v2037 = vpack.c.b16 %v1422, %v1417
    %v2038 = vpack.c.b16 %v1428, %v1423
    %v2039 = vpack.c.b16 %v1429, %v1424
    %v2040 = vpack.c.b16 %v1430, %v1425
    %v2041 = vpack.c.b16 %v1431, %v1426
    %v2042 = vpack.c.b16 %v1432, %v1427
    %v2043 = vpack.c.b16 %v1438, %v1433
    %v2044 = vpack.c.b16 %v1439, %v1434
    %v2045 = vpack.c.b16 %v1440, %v1435
    %v2046 = vpack.c.b16 %v1441, %v1436
    %v2047 = vpack.c.b16 %v1442, %v1437
    %v2048 = vpack.c.b16 %v1448, %v1443
    %v2049 = vpack.c.b16 %v1449, %v1444
    %v2050 = vpack.c.b16 %v1450, %v1445
    %v2051 = vpack.c.b16 %v1451, %v1446
    %v2052 = vpack.c.b16 %v1452, %v1447
    %v2053 = vpack.c.b16 %v1458, %v1453
    %v2054 = vpack.c.b16 %v1459, %v1454
    %v2055 = vpack.c.b16 %v1460, %v1455
    %v2056 = vpack.c.b16 %v1461, %v1456
    %v2057 = vpack.c.b16 %v1462, %v1457
    %v2058 = vpack.c.b16 %v1468, %v1463
    %v2059 = vpack.c.b16 %v1469, %v1464
    %v2060 = vpack.c.b16 %v1470, %v1465
    %v2061 = vpack.c.b16 %v1471, %v1466
    %v2062 = vpack.c.b16 %v1472, %v1467
    %v2063 = vpack.c.b16 %v1478, %v1473
    %v2064 = vpack.c.b16 %v1479, %v1474
    %v2065 = vpack.c.b16 %v1480, %v1475
    %v2066 = vpack.c.b16 %v1481, %v1476
    %v2067 = vpack.c.b16 %v1482, %v1477
    %v2068 = vpack.c.b16 %v1488, %v1483
    %v2069 = vpack.c.b16 %v1489, %v1484
    %v2070 = vpack.c.b16 %v1490, %v1485
    %v2071 = vpack.c.b16 %v1491, %v1486
    %v2072 = vpack.c.b16 %v1492, %v1487
    %v2073 = vpack.c.b16 %v1498, %v1493
    %v2074 = vpack.c.b16 %v1499, %v1494
    %v2075 = vpack.c.b16 %v1500, %v1495
    %v2076 = vpack.c.b16 %v1501, %v1496
    %v2077 = vpack.c.b16 %v1502, %v1497
    %v2078 = vpack.c.b16 %v1508, %v1503
    %v2079 = vpack.c.b16 %v1509, %v1504
    %v2080 = vpack.c.b16 %v1510, %v1505
    %v2081 = vpack.c.b16 %v1511, %v1506
    %v2082 = vpack.c.b16 %v1512, %v1507
    %v2083 = vpack.c.b16 %v1518, %v1513
    %v2084 = vpack.c.b16 %v1519, %v1514
    %v2085 = vpack.c.b16 %v1520, %v1515
    %v2086 = vpack.c.b16 %v1521, %v1516
    %v2087 = vpack.c.b16 %v1522, %v1517
    %v2088 = vpack.c.b16 %v1528, %v1523
    %v2089 = vpack.c.b16 %v1529, %v1524
    %v2090 = vpack.c.b16 %v1530, %v1525
    %v2091 = vpack.c.b16 %v1531, %v1526
    %v2092 = vpack.c.b16 %v1532, %v1527
    %v2093 = vpack.c.b16 %v1538, %v1533
    %v2094 = vpack.c.b16 %v1539, %v1534
    %v2095 = vpack.c.b16 %v1540, %v1535
    %v2096 = vpack.c.b16 %v1541, %v1536
    %v2097 = vpack.c.b16 %v1542, %v1537
    %v2098 = vpack.c.b16 %v1548, %v1543
    %v2099 = vpack.c.b16 %v1549, %v1544
    %v2100 = vpack.c.b16 %v1550, %v1545
    %v2101 = vpack.c.b16 %v1551, %v1546
    %v2102 = vpack.c.b16 %v1552, %v1547
    %v2103 = vpack.c.b16 %v1558, %v1553
    %v2104 = vpack.c.b16 %v1559, %v1554
    %v2105 = vpack.c.b16 %v1560, %v1555
    %v2106 = vpack.c.b16 %v1561, %v1556
    %v2107 = vpack.c.b16 %v1562, %v1557
    %v2108 = vpack.c.b16 %v1568, %v1563
    %v2109 = vpack.c.b16 %v1569, %v1564
    %v2110 = vpack.c.b16 %v1570, %v1565
    %v2111 = vpack.c.b16 %v1571, %v1566
    %v2112 = vpack.c.b16 %v1572, %v1567
    %v2113 = vpack.c.b16 %v1578, %v1573
    %v2114 = vpack.c.b16 %v1579, %v1574
    %v2115 = vpack.c.b16 %v1580, %v1575
    %v2116 = vpack.c.b16 %v1581, %v1576
    %v2117 = vpack.c.b16 %v1582, %v1577
    %v2118 = vpack.c.b16 %v1588, %v1583
    %v2119 = vpack.c.b16 %v1589, %v1584
    %v2120 = vpack.c.b16 %v1590, %v1585
    %v2121 = vpack.c.b16 %v1591, %v1586
    %v2122 = vpack.c.b16 %v1592, %v1587
    %v2123 = vpack.c.b16 %v1598, %v1593
    %v2124 = vpack.c.b16 %v1599, %v1594
    %v2125 = vpack.c.b16 %v1600, %v1595
    %v2126 = vpack.c.b16 %v1601, %v1596
    %v2127 = vpack.c.b16 %v1602, %v1597
    %v2128 = vpack.c.b16 %v1608, %v1603
    %v2129 = vpack.c.b16 %v1609, %v1604
    %v2130 = vpack.c.b16 %v1610, %v1605
    %v2131 = vpack.c.b16 %v1611, %v1606
    %v2132 = vpack.c.b16 %v1612, %v1607
    %v2133 = vpack.c.b16 %v1618, %v1613
    %v2134 = vpack.c.b16 %v1619, %v1614
    %v2135 = vpack.c.b16 %v1620, %v1615
    %v2136 = vpack.c.b16 %v1621, %v1616
    %v2137 = vpack.c.b16 %v1622, %v1617
    %v2138 = vpack.c.b16 %v1628, %v1623
    %v2139 = vpack.c.b16 %v1629, %v1624
    %v2140 = vpack.c.b16 %v1630, %v1625
    %v2141 = vpack.c.b16 %v1631, %v1626
    %v2142 = vpack.c.b16 %v1632, %v1627
    %v2143 = vpack.c.b16 %v1638, %v1633
    %v2144 = vpack.c.b16 %v1639, %v1634
    %v2145 = vpack.c.b16 %v1640, %v1635
    %v2146 = vpack.c.b16 %v1641, %v1636
    %v2147 = vpack.c.b16 %v1642, %v1637
    %v2148 = vpack.c.b16 %v1648, %v1643
    %v2149 = vpack.c.b16 %v1649, %v1644
    %v2150 = vpack.c.b16 %v1650, %v1645
    %v2151 = vpack.c.b16 %v1651, %v1646
    %v2152 = vpack.c.b16 %v1652, %v1647
    %v2153 = vpack.c.b16 %v1658, %v1653
    %v2154 = vpack.c.b16 %v1659, %v1654
    %v2155 = vpack.c.b16 %v1660, %v1655
    %v2156 = vpack.c.b16 %v1661, %v1656
    %v2157 = vpack.c.b16 %v1662, %v1657
    %v2158 = vpack.c.b16 %v1668, %v1663
    %v2159 = vpack.c.b16 %v1669, %v1664
    %v2160 = vpack.c.b16 %v1670, %v1665
    %v2161 = vpack.c.b16 %v1671, %v1666
    %v2162 = vpack.c.b16 %v1672, %v1667
    %v2163 = vpack.c.b16 %v1678, %v1673
    %v2164 = vpack.c.b16 %v1679, %v1674
    %v2165 = vpack.c.b16 %v1680, %v1675
    %v2166 = vpack.c.b16 %v1681, %v1676
    %v2167 = vpack.c.b16 %v1682, %v1677
    %v2168 = vpack.c.b16 %v1688, %v1683
    %v2169 = vpack.c.b16 %v1689, %v1684
    %v2170 = vpack.c.b16 %v1690, %v1685
    %v2171 = vpack.c.b16 %v1691, %v1686
    %v2172 = vpack.c.b16 %v1692, %v1687
    %v2173 = vpack.c.b16 %v1698, %v1693
    %v2174 = vpack.c.b16 %v1699, %v1694
    %v2175 = vpack.c.b16 %v1700, %v1695
    %v2176 = vpack.c.b16 %v1701, %v1696
    %v2177 = vpack.c.b16 %v1702, %v1697
    %v2178 = vpack.c.b16 %v1708, %v1703
    %v2179 = vpack.c.b16 %v1709, %v1704
    %v2180 = vpack.c.b16 %v1710, %v1705
    %v2181 = vpack.c.b16 %v1711, %v1706
    %v2182 = vpack.c.b16 %v1712, %v1707
    %v2183 = vpack.c.b16 %v1718, %v1713
    %v2184 = vpack.c.b16 %v1719, %v1714
    %v2185 = vpack.c.b16 %v1720, %v1715
    %v2186 = vpack.c.b16 %v1721, %v1716
    %v2187 = vpack.c.b16 %v1722, %v1717
    %v2188 = vpack.c.b16 %v1728, %v1723
    %v2189 = vpack.c.b16 %v1729, %v1724
    %v2190 = vpack.c.b16 %v1730, %v1725
    %v2191 = vpack.c.b16 %v1731, %v1726
    %v2192 = vpack.c.b16 %v1732, %v1727
    %v2193 = vpack.c.b16 %v1738, %v1733
    %v2194 = vpack.c.b16 %v1739, %v1734
    %v2195 = vpack.c.b16 %v1740, %v1735
    %v2196 = vpack.c.b16 %v1741, %v1736
    %v2197 = vpack.c.b16 %v1742, %v1737
    %v2198 = vpack.c.b16 %v1748, %v1743
    %v2199 = vpack.c.b16 %v1749, %v1744
    %v2200 = vpack.c.b16 %v1750, %v1745
    %v2201 = vpack.c.b16 %v1751, %v1746
    %v2202 = vpack.c.b16 %v1752, %v1747
    %v2203 = vpack.c.b16 %v1758, %v1753
    %v2204 = vpack.c.b16 %v1759, %v1754
    %v2205 = vpack.c.b16 %v1760, %v1755
    %v2206 = vpack.c.b16 %v1761, %v1756
    %v2207 = vpack.c.b16 %v1762, %v1757
    %v2208 = vpack.c.b16 %v1768, %v1763
    %v2209 = vpack.c.b16 %v1769, %v1764
    %v2210 = vpack.c.b16 %v1770, %v1765
    %v2211 = vpack.c.b16 %v1771, %v1766
    %v2212 = vpack.c.b16 %v1772, %v1767
    %v2213 = vpack.c.b16 %v1778, %v1773
    %v2214 = vpack.c.b16 %v1779, %v1774
    %v2215 = vpack.c.b16 %v1780, %v1775
    %v2216 = vpack.c.b16 %v1781, %v1776
    %v2217 = vpack.c.b16 %v1782, %v1777
    %v2218 = vpack.c.b16 %v1788, %v1783
    %v2219 = vpack.c.b16 %v1789, %v1784
    %v2220 = vpack.c.b16 %v1790, %v1785
    %v2221 = vpack.c.b16 %v1791, %v1786
    %v2222 = vpack.c.b16 %v1792, %v1787
    %v2223 = vpack.c.b16 %v1798, %v1793
    %v2224 = vpack.c.b16 %v1799, %v1794
    %v2225 = vpack.c.b16 %v1800, %v1795
    %v2226 = vpack.c.b16 %v1801, %v1796
    %v2227 = vpack.c.b16 %v1802, %v1797
    %v2228 = vpack.c.b16 %v1808, %v1803
    %v2229 = vpack.c.b16 %v1809, %v1804
    %v2230 = vpack.c.b16 %v1810, %v1805
    %v2231 = vpack.c.b16 %v1811, %v1806
    %v2232 = vpack.c.b16 %v1812, %v1807
    %v2233 = vpack.c.b16 %v1818, %v1813
    %v2234 = vpack.c.b16 %v1819, %v1814
    %v2235 = vpack.c.b16 %v1820, %v1815
    %v2236 = vpack.c.b16 %v1821, %v1816
    %v2237 = vpack.c.b16 %v1822, %v1817
    %v2238 = vpack.c.b16 %v1828, %v1823
    %v2239 = vpack.c.b16 %v1829, %v1824
    %v2240 = vpack.c.b16 %v1830, %v1825
    %v2241 = vpack.c.b16 %v1831, %v1826
    %v2242 = vpack.c.b16 %v1832, %v1827
    %v2243 = vpack.c.b16 %v1838, %v1833
    %v2244 = vpack.c.b16 %v1839, %v1834
    %v2245 = vpack.c.b16 %v1840, %v1835
    %v2246 = vpack.c.b16 %v1841, %v1836
    %v2247 = vpack.c.b16 %v1842, %v1837
    %v2248 = vpack.c.b16 %v1848, %v1843
    %v2249 = vpack.c.b16 %v1849, %v1844
    %v2250 = vpack.c.b16 %v1850, %v1845
    %v2251 = vpack.c.b16 %v1851, %v1846
    %v2252 = vpack.c.b16 %v1852, %v1847
    %v2654 = vperm.slane %v572, 0
    %v2655 = vperm.slane %v572, 1
    %v2656 = vperm.slane %v572, 2
    %v2657 = vperm.slane %v572, 3
    %v2658 = vperm.slane %v572, 4
    %2664 = vmatpush.bf16.msra.mxu0 %v1888
    %2665 = vmatpush.bf16.msra.mxu0 %v1883
    %2666 = vmatpush.bf16.msra.mxu0 %v1878
    %2667 = vmatpush.bf16.msra.mxu0 %v1873
    %2668 = vmatpush.bf16.msra.mxu0 %v1868
    %2669 = vmatpush.bf16.msra.mxu0 %v1863
    %2670 = vmatpush.bf16.msra.mxu0 %v1858
    %2671 = vmatpush.bf16.msra.mxu0 %v1853
    %2672 = vmatmul.bf16.gmra.mxu0 %v82
    %v2673 = vpop.f32.mrf.mxu0
    %v2674 = vadd.f32 %v2654, %v2673
    %v2675 = vpop.f32.mrf.mxu0
    %2676 = vdwg.mxu0
    %2677 = vmatpush.bf16.msra.mxu0 %v1928
    %2678 = vmatpush.bf16.msra.mxu0 %v1923
    %2679 = vmatpush.bf16.msra.mxu0 %v1918
    %2680 = vmatpush.bf16.msra.mxu0 %v1913
    %2681 = vmatpush.bf16.msra.mxu0 %v1908
    %2682 = vmatpush.bf16.msra.mxu0 %v1903
    %2683 = vmatpush.bf16.msra.mxu0 %v1898
    %2684 = vmatpush.bf16.msra.mxu0 %v1893
    %2685 = vmatmul.bf16.gmra.mxu0 %v83
    %v2686 = vpop.f32.mrf.mxu0
    %v2687 = vadd.f32 %v2674, %v2686
    %v2688 = vpop.f32.mrf.mxu0
    %2689 = vdwg.mxu0
    %2690 = vmatpush.bf16.msra.mxu0 %v1968
    %2691 = vmatpush.bf16.msra.mxu0 %v1963
    %2692 = vmatpush.bf16.msra.mxu0 %v1958
    %2693 = vmatpush.bf16.msra.mxu0 %v1953
    %2694 = vmatpush.bf16.msra.mxu0 %v1948
    %2695 = vmatpush.bf16.msra.mxu0 %v1943
    %2696 = vmatpush.bf16.msra.mxu0 %v1938
    %2697 = vmatpush.bf16.msra.mxu0 %v1933
    %2698 = vmatmul.bf16.gmra.mxu0 %v84
    %v2699 = vpop.f32.mrf.mxu0
    %v2700 = vadd.f32 %v2687, %v2699
    %v2701 = vpop.f32.mrf.mxu0
    %2702 = vdwg.mxu0
    %2703 = vmatpush.bf16.msra.mxu0 %v2008
    %2704 = vmatpush.bf16.msra.mxu0 %v2003
    %2705 = vmatpush.bf16.msra.mxu0 %v1998
    %2706 = vmatpush.bf16.msra.mxu0 %v1993
    %2707 = vmatpush.bf16.msra.mxu0 %v1988
    %2708 = vmatpush.bf16.msra.mxu0 %v1983
    %2709 = vmatpush.bf16.msra.mxu0 %v1978
    %2710 = vmatpush.bf16.msra.mxu0 %v1973
    %2711 = vmatmul.bf16.gmra.mxu0 %v85
    %v2712 = vpop.f32.mrf.mxu0
    %v2713 = vadd.f32 %v2700, %v2712
    %v2714 = vpop.f32.mrf.mxu0
    %2715 = vdwg.mxu0
    %2716 = vmatpush.bf16.msra.mxu0 %v2048
    %2717 = vmatpush.bf16.msra.mxu0 %v2043
    %2718 = vmatpush.bf16.msra.mxu0 %v2038
    %2719 = vmatpush.bf16.msra.mxu0 %v2033
    %2720 = vmatpush.bf16.msra.mxu0 %v2028
    %2721 = vmatpush.bf16.msra.mxu0 %v2023
    %2722 = vmatpush.bf16.msra.mxu0 %v2018
    %2723 = vmatpush.bf16.msra.mxu0 %v2013
    %2724 = vmatmul.bf16.gmra.mxu0 %v86
    %v2725 = vpop.f32.mrf.mxu0
    %v2726 = vadd.f32 %v2713, %v2725
    %v2727 = vpop.f32.mrf.mxu0
    %2728 = vdwg.mxu0
    %2729 = vmatpush.bf16.msra.mxu0 %v2088
    %2730 = vmatpush.bf16.msra.mxu0 %v2083
    %2731 = vmatpush.bf16.msra.mxu0 %v2078
    %2732 = vmatpush.bf16.msra.mxu0 %v2073
    %2733 = vmatpush.bf16.msra.mxu0 %v2068
    %2734 = vmatpush.bf16.msra.mxu0 %v2063
    %2735 = vmatpush.bf16.msra.mxu0 %v2058
    %2736 = vmatpush.bf16.msra.mxu0 %v2053
    %2737 = vmatmul.bf16.gmra.mxu0 %v87
    %v2738 = vpop.f32.mrf.mxu0
    %v2739 = vadd.f32 %v2726, %v2738
    %v2740 = vpop.f32.mrf.mxu0
    %2741 = vdwg.mxu0
    %2742 = vmatpush.bf16.msra.mxu0 %v2128
    %2743 = vmatpush.bf16.msra.mxu0 %v2123
    %2744 = vmatpush.bf16.msra.mxu0 %v2118
    %2745 = vmatpush.bf16.msra.mxu0 %v2113
    %2746 = vmatpush.bf16.msra.mxu0 %v2108
    %2747 = vmatpush.bf16.msra.mxu0 %v2103
    %2748 = vmatpush.bf16.msra.mxu0 %v2098
    %2749 = vmatpush.bf16.msra.mxu0 %v2093
    %2750 = vmatmul.bf16.gmra.mxu0 %v88
    %v2751 = vpop.f32.mrf.mxu0
    %v2752 = vadd.f32 %v2739, %v2751
    %v2753 = vpop.f32.mrf.mxu0
    %2754 = vdwg.mxu0
    %2755 = vmatpush.bf16.msra.mxu0 %v2168
    %2756 = vmatpush.bf16.msra.mxu0 %v2163
    %2757 = vmatpush.bf16.msra.mxu0 %v2158
    %2758 = vmatpush.bf16.msra.mxu0 %v2153
    %2759 = vmatpush.bf16.msra.mxu0 %v2148
    %2760 = vmatpush.bf16.msra.mxu0 %v2143
    %2761 = vmatpush.bf16.msra.mxu0 %v2138
    %2762 = vmatpush.bf16.msra.mxu0 %v2133
    %2763 = vmatmul.bf16.gmra.mxu0 %v89
    %v2764 = vpop.f32.mrf.mxu0
    %v2765 = vadd.f32 %v2752, %v2764
    %v2766 = vpop.f32.mrf.mxu0
    %2767 = vdwg.mxu0
    %2768 = vmatpush.bf16.msra.mxu0 %v2208
    %2769 = vmatpush.bf16.msra.mxu0 %v2203
    %2770 = vmatpush.bf16.msra.mxu0 %v2198
    %2771 = vmatpush.bf16.msra.mxu0 %v2193
    %2772 = vmatpush.bf16.msra.mxu0 %v2188
    %2773 = vmatpush.bf16.msra.mxu0 %v2183
    %2774 = vmatpush.bf16.msra.mxu0 %v2178
    %2775 = vmatpush.bf16.msra.mxu0 %v2173
    %2776 = vmatmul.bf16.gmra.mxu0 %v90
    %v2777 = vpop.f32.mrf.mxu0
    %v2778 = vadd.f32 %v2765, %v2777
    %v2779 = vpop.f32.mrf.mxu0
    %2780 = vdwg.mxu0
    %2781 = vmatpush.bf16.msra.mxu0 %v2248
    %2782 = vmatpush.bf16.msra.mxu0 %v2243
    %2783 = vmatpush.bf16.msra.mxu0 %v2238
    %2784 = vmatpush.bf16.msra.mxu0 %v2233
    %2785 = vmatpush.bf16.msra.mxu0 %v2228
    %2786 = vmatpush.bf16.msra.mxu0 %v2223
    %2787 = vmatpush.bf16.msra.mxu0 %v2218
    %2788 = vmatpush.bf16.msra.mxu0 %v2213
    %2789 = vmatmul.bf16.gmra.mxu0 %v91
    %v2790 = vpop.f32.mrf.mxu0
    %v2791 = vadd.f32 %v2778, %v2790
    %v2792 = vpop.f32.mrf.mxu0
    %2793 = vdwg.mxu0
    %2794 = vmatpush.bf16.msra.mxu0 %v1889
    %2795 = vmatpush.bf16.msra.mxu0 %v1884
    %2796 = vmatpush.bf16.msra.mxu0 %v1879
    %2797 = vmatpush.bf16.msra.mxu0 %v1874
    %2798 = vmatpush.bf16.msra.mxu0 %v1869
    %2799 = vmatpush.bf16.msra.mxu0 %v1864
    %2800 = vmatpush.bf16.msra.mxu0 %v1859
    %2801 = vmatpush.bf16.msra.mxu0 %v1854
    %2802 = vmatmul.bf16.gmra.mxu0 %v82
    %v2803 = vpop.f32.mrf.mxu0
    %v2804 = vadd.f32 %v2655, %v2803
    %v2805 = vpop.f32.mrf.mxu0
    %2806 = vdwg.mxu0
    %2807 = vmatpush.bf16.msra.mxu0 %v1929
    %2808 = vmatpush.bf16.msra.mxu0 %v1924
    %2809 = vmatpush.bf16.msra.mxu0 %v1919
    %2810 = vmatpush.bf16.msra.mxu0 %v1914
    %2811 = vmatpush.bf16.msra.mxu0 %v1909
    %2812 = vmatpush.bf16.msra.mxu0 %v1904
    %2813 = vmatpush.bf16.msra.mxu0 %v1899
    %2814 = vmatpush.bf16.msra.mxu0 %v1894
    %2815 = vmatmul.bf16.gmra.mxu0 %v83
    %v2816 = vpop.f32.mrf.mxu0
    %v2817 = vadd.f32 %v2804, %v2816
    %v2818 = vpop.f32.mrf.mxu0
    %2819 = vdwg.mxu0
    %2820 = vmatpush.bf16.msra.mxu0 %v1969
    %2821 = vmatpush.bf16.msra.mxu0 %v1964
    %2822 = vmatpush.bf16.msra.mxu0 %v1959
    %2823 = vmatpush.bf16.msra.mxu0 %v1954
    %2824 = vmatpush.bf16.msra.mxu0 %v1949
    %2825 = vmatpush.bf16.msra.mxu0 %v1944
    %2826 = vmatpush.bf16.msra.mxu0 %v1939
    %2827 = vmatpush.bf16.msra.mxu0 %v1934
    %2828 = vmatmul.bf16.gmra.mxu0 %v84
    %v2829 = vpop.f32.mrf.mxu0
    %v2830 = vadd.f32 %v2817, %v2829
    %v2831 = vpop.f32.mrf.mxu0
    %2832 = vdwg.mxu0
    %2833 = vmatpush.bf16.msra.mxu0 %v2009
    %2834 = vmatpush.bf16.msra.mxu0 %v2004
    %2835 = vmatpush.bf16.msra.mxu0 %v1999
    %2836 = vmatpush.bf16.msra.mxu0 %v1994
    %2837 = vmatpush.bf16.msra.mxu0 %v1989
    %2838 = vmatpush.bf16.msra.mxu0 %v1984
    %2839 = vmatpush.bf16.msra.mxu0 %v1979
    %2840 = vmatpush.bf16.msra.mxu0 %v1974
    %2841 = vmatmul.bf16.gmra.mxu0 %v85
    %v2842 = vpop.f32.mrf.mxu0
    %v2843 = vadd.f32 %v2830, %v2842
    %v2844 = vpop.f32.mrf.mxu0
    %2845 = vdwg.mxu0
    %2846 = vmatpush.bf16.msra.mxu0 %v2049
    %2847 = vmatpush.bf16.msra.mxu0 %v2044
    %2848 = vmatpush.bf16.msra.mxu0 %v2039
    %2849 = vmatpush.bf16.msra.mxu0 %v2034
    %2850 = vmatpush.bf16.msra.mxu0 %v2029
    %2851 = vmatpush.bf16.msra.mxu0 %v2024
    %2852 = vmatpush.bf16.msra.mxu0 %v2019
    %2853 = vmatpush.bf16.msra.mxu0 %v2014
    %2854 = vmatmul.bf16.gmra.mxu0 %v86
    %v2855 = vpop.f32.mrf.mxu0
    %v2856 = vadd.f32 %v2843, %v2855
    %v2857 = vpop.f32.mrf.mxu0
    %2858 = vdwg.mxu0
    %2859 = vmatpush.bf16.msra.mxu0 %v2089
    %2860 = vmatpush.bf16.msra.mxu0 %v2084
    %2861 = vmatpush.bf16.msra.mxu0 %v2079
    %2862 = vmatpush.bf16.msra.mxu0 %v2074
    %2863 = vmatpush.bf16.msra.mxu0 %v2069
    %2864 = vmatpush.bf16.msra.mxu0 %v2064
    %2865 = vmatpush.bf16.msra.mxu0 %v2059
    %2866 = vmatpush.bf16.msra.mxu0 %v2054
    %2867 = vmatmul.bf16.gmra.mxu0 %v87
    %v2868 = vpop.f32.mrf.mxu0
    %v2869 = vadd.f32 %v2856, %v2868
    %v2870 = vpop.f32.mrf.mxu0
    %2871 = vdwg.mxu0
    %2872 = vmatpush.bf16.msra.mxu0 %v2129
    %2873 = vmatpush.bf16.msra.mxu0 %v2124
    %2874 = vmatpush.bf16.msra.mxu0 %v2119
    %2875 = vmatpush.bf16.msra.mxu0 %v2114
    %2876 = vmatpush.bf16.msra.mxu0 %v2109
    %2877 = vmatpush.bf16.msra.mxu0 %v2104
    %2878 = vmatpush.bf16.msra.mxu0 %v2099
    %2879 = vmatpush.bf16.msra.mxu0 %v2094
    %2880 = vmatmul.bf16.gmra.mxu0 %v88
    %v2881 = vpop.f32.mrf.mxu0
    %v2882 = vadd.f32 %v2869, %v2881
    %v2883 = vpop.f32.mrf.mxu0
    %2884 = vdwg.mxu0
    %2885 = vmatpush.bf16.msra.mxu0 %v2169
    %2886 = vmatpush.bf16.msra.mxu0 %v2164
    %2887 = vmatpush.bf16.msra.mxu0 %v2159
    %2888 = vmatpush.bf16.msra.mxu0 %v2154
    %2889 = vmatpush.bf16.msra.mxu0 %v2149
    %2890 = vmatpush.bf16.msra.mxu0 %v2144
    %2891 = vmatpush.bf16.msra.mxu0 %v2139
    %2892 = vmatpush.bf16.msra.mxu0 %v2134
    %2893 = vmatmul.bf16.gmra.mxu0 %v89
    %v2894 = vpop.f32.mrf.mxu0
    %v2895 = vadd.f32 %v2882, %v2894
    %v2896 = vpop.f32.mrf.mxu0
    %2897 = vdwg.mxu0
    %2898 = vmatpush.bf16.msra.mxu0 %v2209
    %2899 = vmatpush.bf16.msra.mxu0 %v2204
    %2900 = vmatpush.bf16.msra.mxu0 %v2199
    %2901 = vmatpush.bf16.msra.mxu0 %v2194
    %2902 = vmatpush.bf16.msra.mxu0 %v2189
    %2903 = vmatpush.bf16.msra.mxu0 %v2184
    %2904 = vmatpush.bf16.msra.mxu0 %v2179
    %2905 = vmatpush.bf16.msra.mxu0 %v2174
    %2906 = vmatmul.bf16.gmra.mxu0 %v90
    %v2907 = vpop.f32.mrf.mxu0
    %v2908 = vadd.f32 %v2895, %v2907
    %v2909 = vpop.f32.mrf.mxu0
    %2910 = vdwg.mxu0
    %2911 = vmatpush.bf16.msra.mxu0 %v2249
    %2912 = vmatpush.bf16.msra.mxu0 %v2244
    %2913 = vmatpush.bf16.msra.mxu0 %v2239
    %2914 = vmatpush.bf16.msra.mxu0 %v2234
    %2915 = vmatpush.bf16.msra.mxu0 %v2229
    %2916 = vmatpush.bf16.msra.mxu0 %v2224
    %2917 = vmatpush.bf16.msra.mxu0 %v2219
    %2918 = vmatpush.bf16.msra.mxu0 %v2214
    %2919 = vmatmul.bf16.gmra.mxu0 %v91
    %v2920 = vpop.f32.mrf.mxu0
    %v2921 = vadd.f32 %v2908, %v2920
    %v2922 = vpop.f32.mrf.mxu0
    %2923 = vdwg.mxu0
    %2924 = vmatpush.bf16.msra.mxu0 %v1890
    %2925 = vmatpush.bf16.msra.mxu0 %v1885
    %2926 = vmatpush.bf16.msra.mxu0 %v1880
    %2927 = vmatpush.bf16.msra.mxu0 %v1875
    %2928 = vmatpush.bf16.msra.mxu0 %v1870
    %2929 = vmatpush.bf16.msra.mxu0 %v1865
    %2930 = vmatpush.bf16.msra.mxu0 %v1860
    %2931 = vmatpush.bf16.msra.mxu0 %v1855
    %2932 = vmatmul.bf16.gmra.mxu0 %v82
    %v2933 = vpop.f32.mrf.mxu0
    %v2934 = vadd.f32 %v2656, %v2933
    %v2935 = vpop.f32.mrf.mxu0
    %2936 = vdwg.mxu0
    %2937 = vmatpush.bf16.msra.mxu0 %v1930
    %2938 = vmatpush.bf16.msra.mxu0 %v1925
    %2939 = vmatpush.bf16.msra.mxu0 %v1920
    %2940 = vmatpush.bf16.msra.mxu0 %v1915
    %2941 = vmatpush.bf16.msra.mxu0 %v1910
    %2942 = vmatpush.bf16.msra.mxu0 %v1905
    %2943 = vmatpush.bf16.msra.mxu0 %v1900
    %2944 = vmatpush.bf16.msra.mxu0 %v1895
    %2945 = vmatmul.bf16.gmra.mxu0 %v83
    %v2946 = vpop.f32.mrf.mxu0
    %v2947 = vadd.f32 %v2934, %v2946
    %v2948 = vpop.f32.mrf.mxu0
    %2949 = vdwg.mxu0
    %2950 = vmatpush.bf16.msra.mxu0 %v1970
    %2951 = vmatpush.bf16.msra.mxu0 %v1965
    %2952 = vmatpush.bf16.msra.mxu0 %v1960
    %2953 = vmatpush.bf16.msra.mxu0 %v1955
    %2954 = vmatpush.bf16.msra.mxu0 %v1950
    %2955 = vmatpush.bf16.msra.mxu0 %v1945
    %2956 = vmatpush.bf16.msra.mxu0 %v1940
    %2957 = vmatpush.bf16.msra.mxu0 %v1935
    %2958 = vmatmul.bf16.gmra.mxu0 %v84
    %v2959 = vpop.f32.mrf.mxu0
    %v2960 = vadd.f32 %v2947, %v2959
    %v2961 = vpop.f32.mrf.mxu0
    %2962 = vdwg.mxu0
    %2963 = vmatpush.bf16.msra.mxu0 %v2010
    %2964 = vmatpush.bf16.msra.mxu0 %v2005
    %2965 = vmatpush.bf16.msra.mxu0 %v2000
    %2966 = vmatpush.bf16.msra.mxu0 %v1995
    %2967 = vmatpush.bf16.msra.mxu0 %v1990
    %2968 = vmatpush.bf16.msra.mxu0 %v1985
    %2969 = vmatpush.bf16.msra.mxu0 %v1980
    %2970 = vmatpush.bf16.msra.mxu0 %v1975
    %2971 = vmatmul.bf16.gmra.mxu0 %v85
    %v2972 = vpop.f32.mrf.mxu0
    %v2973 = vadd.f32 %v2960, %v2972
    %v2974 = vpop.f32.mrf.mxu0
    %2975 = vdwg.mxu0
    %2976 = vmatpush.bf16.msra.mxu0 %v2050
    %2977 = vmatpush.bf16.msra.mxu0 %v2045
    %2978 = vmatpush.bf16.msra.mxu0 %v2040
    %2979 = vmatpush.bf16.msra.mxu0 %v2035
    %2980 = vmatpush.bf16.msra.mxu0 %v2030
    %2981 = vmatpush.bf16.msra.mxu0 %v2025
    %2982 = vmatpush.bf16.msra.mxu0 %v2020
    %2983 = vmatpush.bf16.msra.mxu0 %v2015
    %2984 = vmatmul.bf16.gmra.mxu0 %v86
    %v2985 = vpop.f32.mrf.mxu0
    %v2986 = vadd.f32 %v2973, %v2985
    %v2987 = vpop.f32.mrf.mxu0
    %2988 = vdwg.mxu0
    %2989 = vmatpush.bf16.msra.mxu0 %v2090
    %2990 = vmatpush.bf16.msra.mxu0 %v2085
    %2991 = vmatpush.bf16.msra.mxu0 %v2080
    %2992 = vmatpush.bf16.msra.mxu0 %v2075
    %2993 = vmatpush.bf16.msra.mxu0 %v2070
    %2994 = vmatpush.bf16.msra.mxu0 %v2065
    %2995 = vmatpush.bf16.msra.mxu0 %v2060
    %2996 = vmatpush.bf16.msra.mxu0 %v2055
    %2997 = vmatmul.bf16.gmra.mxu0 %v87
    %v2998 = vpop.f32.mrf.mxu0
    %v2999 = vadd.f32 %v2986, %v2998
    %v3000 = vpop.f32.mrf.mxu0
    %3001 = vdwg.mxu0
    %3002 = vmatpush.bf16.msra.mxu0 %v2130
    %3003 = vmatpush.bf16.msra.mxu0 %v2125
    %3004 = vmatpush.bf16.msra.mxu0 %v2120
    %3005 = vmatpush.bf16.msra.mxu0 %v2115
    %3006 = vmatpush.bf16.msra.mxu0 %v2110
    %3007 = vmatpush.bf16.msra.mxu0 %v2105
    %3008 = vmatpush.bf16.msra.mxu0 %v2100
    %3009 = vmatpush.bf16.msra.mxu0 %v2095
    %3010 = vmatmul.bf16.gmra.mxu0 %v88
    %v3011 = vpop.f32.mrf.mxu0
    %v3012 = vadd.f32 %v2999, %v3011
    %v3013 = vpop.f32.mrf.mxu0
    %3014 = vdwg.mxu0
    %3015 = vmatpush.bf16.msra.mxu0 %v2170
    %3016 = vmatpush.bf16.msra.mxu0 %v2165
    %3017 = vmatpush.bf16.msra.mxu0 %v2160
    %3018 = vmatpush.bf16.msra.mxu0 %v2155
    %3019 = vmatpush.bf16.msra.mxu0 %v2150
    %3020 = vmatpush.bf16.msra.mxu0 %v2145
    %3021 = vmatpush.bf16.msra.mxu0 %v2140
    %3022 = vmatpush.bf16.msra.mxu0 %v2135
    %3023 = vmatmul.bf16.gmra.mxu0 %v89
    %v3024 = vpop.f32.mrf.mxu0
    %v3025 = vadd.f32 %v3012, %v3024
    %v3026 = vpop.f32.mrf.mxu0
    %3027 = vdwg.mxu0
    %3028 = vmatpush.bf16.msra.mxu0 %v2210
    %3029 = vmatpush.bf16.msra.mxu0 %v2205
    %3030 = vmatpush.bf16.msra.mxu0 %v2200
    %3031 = vmatpush.bf16.msra.mxu0 %v2195
    %3032 = vmatpush.bf16.msra.mxu0 %v2190
    %3033 = vmatpush.bf16.msra.mxu0 %v2185
    %3034 = vmatpush.bf16.msra.mxu0 %v2180
    %3035 = vmatpush.bf16.msra.mxu0 %v2175
    %3036 = vmatmul.bf16.gmra.mxu0 %v90
    %v3037 = vpop.f32.mrf.mxu0
    %v3038 = vadd.f32 %v3025, %v3037
    %v3039 = vpop.f32.mrf.mxu0
    %3040 = vdwg.mxu0
    %3041 = vmatpush.bf16.msra.mxu0 %v2250
    %3042 = vmatpush.bf16.msra.mxu0 %v2245
    %3043 = vmatpush.bf16.msra.mxu0 %v2240
    %3044 = vmatpush.bf16.msra.mxu0 %v2235
    %3045 = vmatpush.bf16.msra.mxu0 %v2230
    %3046 = vmatpush.bf16.msra.mxu0 %v2225
    %3047 = vmatpush.bf16.msra.mxu0 %v2220
    %3048 = vmatpush.bf16.msra.mxu0 %v2215
    %3049 = vmatmul.bf16.gmra.mxu0 %v91
    %v3050 = vpop.f32.mrf.mxu0
    %v3051 = vadd.f32 %v3038, %v3050
    %v3052 = vpop.f32.mrf.mxu0
    %3053 = vdwg.mxu0
    %3054 = vmatpush.bf16.msra.mxu0 %v1891
    %3055 = vmatpush.bf16.msra.mxu0 %v1886
    %3056 = vmatpush.bf16.msra.mxu0 %v1881
    %3057 = vmatpush.bf16.msra.mxu0 %v1876
    %3058 = vmatpush.bf16.msra.mxu0 %v1871
    %3059 = vmatpush.bf16.msra.mxu0 %v1866
    %3060 = vmatpush.bf16.msra.mxu0 %v1861
    %3061 = vmatpush.bf16.msra.mxu0 %v1856
    %3062 = vmatmul.bf16.gmra.mxu0 %v82
    %v3063 = vpop.f32.mrf.mxu0
    %v3064 = vadd.f32 %v2657, %v3063
    %v3065 = vpop.f32.mrf.mxu0
    %3066 = vdwg.mxu0
    %3067 = vmatpush.bf16.msra.mxu0 %v1931
    %3068 = vmatpush.bf16.msra.mxu0 %v1926
    %3069 = vmatpush.bf16.msra.mxu0 %v1921
    %3070 = vmatpush.bf16.msra.mxu0 %v1916
    %3071 = vmatpush.bf16.msra.mxu0 %v1911
    %3072 = vmatpush.bf16.msra.mxu0 %v1906
    %3073 = vmatpush.bf16.msra.mxu0 %v1901
    %3074 = vmatpush.bf16.msra.mxu0 %v1896
    %3075 = vmatmul.bf16.gmra.mxu0 %v83
    %v3076 = vpop.f32.mrf.mxu0
    %v3077 = vadd.f32 %v3064, %v3076
    %v3078 = vpop.f32.mrf.mxu0
    %3079 = vdwg.mxu0
    %3080 = vmatpush.bf16.msra.mxu0 %v1971
    %3081 = vmatpush.bf16.msra.mxu0 %v1966
    %3082 = vmatpush.bf16.msra.mxu0 %v1961
    %3083 = vmatpush.bf16.msra.mxu0 %v1956
    %3084 = vmatpush.bf16.msra.mxu0 %v1951
    %3085 = vmatpush.bf16.msra.mxu0 %v1946
    %3086 = vmatpush.bf16.msra.mxu0 %v1941
    %3087 = vmatpush.bf16.msra.mxu0 %v1936
    %3088 = vmatmul.bf16.gmra.mxu0 %v84
    %v3089 = vpop.f32.mrf.mxu0
    %v3090 = vadd.f32 %v3077, %v3089
    %v3091 = vpop.f32.mrf.mxu0
    %3092 = vdwg.mxu0
    %3093 = vmatpush.bf16.msra.mxu0 %v2011
    %3094 = vmatpush.bf16.msra.mxu0 %v2006
    %3095 = vmatpush.bf16.msra.mxu0 %v2001
    %3096 = vmatpush.bf16.msra.mxu0 %v1996
    %3097 = vmatpush.bf16.msra.mxu0 %v1991
    %3098 = vmatpush.bf16.msra.mxu0 %v1986
    %3099 = vmatpush.bf16.msra.mxu0 %v1981
    %3100 = vmatpush.bf16.msra.mxu0 %v1976
    %3101 = vmatmul.bf16.gmra.mxu0 %v85
    %v3102 = vpop.f32.mrf.mxu0
    %v3103 = vadd.f32 %v3090, %v3102
    %v3104 = vpop.f32.mrf.mxu0
    %3105 = vdwg.mxu0
    %3106 = vmatpush.bf16.msra.mxu0 %v2051
    %3107 = vmatpush.bf16.msra.mxu0 %v2046
    %3108 = vmatpush.bf16.msra.mxu0 %v2041
    %3109 = vmatpush.bf16.msra.mxu0 %v2036
    %3110 = vmatpush.bf16.msra.mxu0 %v2031
    %3111 = vmatpush.bf16.msra.mxu0 %v2026
    %3112 = vmatpush.bf16.msra.mxu0 %v2021
    %3113 = vmatpush.bf16.msra.mxu0 %v2016
    %3114 = vmatmul.bf16.gmra.mxu0 %v86
    %v3115 = vpop.f32.mrf.mxu0
    %v3116 = vadd.f32 %v3103, %v3115
    %v3117 = vpop.f32.mrf.mxu0
    %3118 = vdwg.mxu0
    %3119 = vmatpush.bf16.msra.mxu0 %v2091
    %3120 = vmatpush.bf16.msra.mxu0 %v2086
    %3121 = vmatpush.bf16.msra.mxu0 %v2081
    %3122 = vmatpush.bf16.msra.mxu0 %v2076
    %3123 = vmatpush.bf16.msra.mxu0 %v2071
    %3124 = vmatpush.bf16.msra.mxu0 %v2066
    %3125 = vmatpush.bf16.msra.mxu0 %v2061
    %3126 = vmatpush.bf16.msra.mxu0 %v2056
    %3127 = vmatmul.bf16.gmra.mxu0 %v87
    %v3128 = vpop.f32.mrf.mxu0
    %v3129 = vadd.f32 %v3116, %v3128
    %v3130 = vpop.f32.mrf.mxu0
    %3131 = vdwg.mxu0
    %3132 = vmatpush.bf16.msra.mxu0 %v2131
    %3133 = vmatpush.bf16.msra.mxu0 %v2126
    %3134 = vmatpush.bf16.msra.mxu0 %v2121
    %3135 = vmatpush.bf16.msra.mxu0 %v2116
    %3136 = vmatpush.bf16.msra.mxu0 %v2111
    %3137 = vmatpush.bf16.msra.mxu0 %v2106
    %3138 = vmatpush.bf16.msra.mxu0 %v2101
    %3139 = vmatpush.bf16.msra.mxu0 %v2096
    %3140 = vmatmul.bf16.gmra.mxu0 %v88
    %v3141 = vpop.f32.mrf.mxu0
    %v3142 = vadd.f32 %v3129, %v3141
    %v3143 = vpop.f32.mrf.mxu0
    %3144 = vdwg.mxu0
    %3145 = vmatpush.bf16.msra.mxu0 %v2171
    %3146 = vmatpush.bf16.msra.mxu0 %v2166
    %3147 = vmatpush.bf16.msra.mxu0 %v2161
    %3148 = vmatpush.bf16.msra.mxu0 %v2156
    %3149 = vmatpush.bf16.msra.mxu0 %v2151
    %3150 = vmatpush.bf16.msra.mxu0 %v2146
    %3151 = vmatpush.bf16.msra.mxu0 %v2141
    %3152 = vmatpush.bf16.msra.mxu0 %v2136
    %3153 = vmatmul.bf16.gmra.mxu0 %v89
    %v3154 = vpop.f32.mrf.mxu0
    %v3155 = vadd.f32 %v3142, %v3154
    %v3156 = vpop.f32.mrf.mxu0
    %3157 = vdwg.mxu0
    %3158 = vmatpush.bf16.msra.mxu0 %v2211
    %3159 = vmatpush.bf16.msra.mxu0 %v2206
    %3160 = vmatpush.bf16.msra.mxu0 %v2201
    %3161 = vmatpush.bf16.msra.mxu0 %v2196
    %3162 = vmatpush.bf16.msra.mxu0 %v2191
    %3163 = vmatpush.bf16.msra.mxu0 %v2186
    %3164 = vmatpush.bf16.msra.mxu0 %v2181
    %3165 = vmatpush.bf16.msra.mxu0 %v2176
    %3166 = vmatmul.bf16.gmra.mxu0 %v90
    %v3167 = vpop.f32.mrf.mxu0
    %v3168 = vadd.f32 %v3155, %v3167
    %v3169 = vpop.f32.mrf.mxu0
    %3170 = vdwg.mxu0
    %3171 = vmatpush.bf16.msra.mxu0 %v2251
    %3172 = vmatpush.bf16.msra.mxu0 %v2246
    %3173 = vmatpush.bf16.msra.mxu0 %v2241
    %3174 = vmatpush.bf16.msra.mxu0 %v2236
    %3175 = vmatpush.bf16.msra.mxu0 %v2231
    %3176 = vmatpush.bf16.msra.mxu0 %v2226
    %3177 = vmatpush.bf16.msra.mxu0 %v2221
    %3178 = vmatpush.bf16.msra.mxu0 %v2216
    %3179 = vmatmul.bf16.gmra.mxu0 %v91
    %v3180 = vpop.f32.mrf.mxu0
    %v3181 = vadd.f32 %v3168, %v3180
    %v3182 = vpop.f32.mrf.mxu0
    %3183 = vdwg.mxu0
    %3184 = vmatpush.bf16.msra.mxu0 %v1892
    %3185 = vmatpush.bf16.msra.mxu0 %v1887
    %3186 = vmatpush.bf16.msra.mxu0 %v1882
    %3187 = vmatpush.bf16.msra.mxu0 %v1877
    %3188 = vmatpush.bf16.msra.mxu0 %v1872
    %3189 = vmatpush.bf16.msra.mxu0 %v1867
    %3190 = vmatpush.bf16.msra.mxu0 %v1862
    %3191 = vmatpush.bf16.msra.mxu0 %v1857
    %3192 = vmatmul.bf16.gmra.mxu0 %v82
    %v3193 = vpop.f32.mrf.mxu0
    %v3194 = vadd.f32 %v2658, %v3193
    %v3195 = vpop.f32.mrf.mxu0
    %3196 = vdwg.mxu0
    %3197 = vmatpush.bf16.msra.mxu0 %v1932
    %3198 = vmatpush.bf16.msra.mxu0 %v1927
    %3199 = vmatpush.bf16.msra.mxu0 %v1922
    %3200 = vmatpush.bf16.msra.mxu0 %v1917
    %3201 = vmatpush.bf16.msra.mxu0 %v1912
    %3202 = vmatpush.bf16.msra.mxu0 %v1907
    %3203 = vmatpush.bf16.msra.mxu0 %v1902
    %3204 = vmatpush.bf16.msra.mxu0 %v1897
    %3205 = vmatmul.bf16.gmra.mxu0 %v83
    %v3206 = vpop.f32.mrf.mxu0
    %v3207 = vadd.f32 %v3194, %v3206
    %v3208 = vpop.f32.mrf.mxu0
    %3209 = vdwg.mxu0
    %3210 = vmatpush.bf16.msra.mxu0 %v1972
    %3211 = vmatpush.bf16.msra.mxu0 %v1967
    %3212 = vmatpush.bf16.msra.mxu0 %v1962
    %3213 = vmatpush.bf16.msra.mxu0 %v1957
    %3214 = vmatpush.bf16.msra.mxu0 %v1952
    %3215 = vmatpush.bf16.msra.mxu0 %v1947
    %3216 = vmatpush.bf16.msra.mxu0 %v1942
    %3217 = vmatpush.bf16.msra.mxu0 %v1937
    %3218 = vmatmul.bf16.gmra.mxu0 %v84
    %v3219 = vpop.f32.mrf.mxu0
    %v3220 = vadd.f32 %v3207, %v3219
    %v3221 = vpop.f32.mrf.mxu0
    %3222 = vdwg.mxu0
    %3223 = vmatpush.bf16.msra.mxu0 %v2012
    %3224 = vmatpush.bf16.msra.mxu0 %v2007
    %3225 = vmatpush.bf16.msra.mxu0 %v2002
    %3226 = vmatpush.bf16.msra.mxu0 %v1997
    %3227 = vmatpush.bf16.msra.mxu0 %v1992
    %3228 = vmatpush.bf16.msra.mxu0 %v1987
    %3229 = vmatpush.bf16.msra.mxu0 %v1982
    %3230 = vmatpush.bf16.msra.mxu0 %v1977
    %3231 = vmatmul.bf16.gmra.mxu0 %v85
    %v3232 = vpop.f32.mrf.mxu0
    %v3233 = vadd.f32 %v3220, %v3232
    %v3234 = vpop.f32.mrf.mxu0
    %3235 = vdwg.mxu0
    %3236 = vmatpush.bf16.msra.mxu0 %v2052
    %3237 = vmatpush.bf16.msra.mxu0 %v2047
    %3238 = vmatpush.bf16.msra.mxu0 %v2042
    %3239 = vmatpush.bf16.msra.mxu0 %v2037
    %3240 = vmatpush.bf16.msra.mxu0 %v2032
    %3241 = vmatpush.bf16.msra.mxu0 %v2027
    %3242 = vmatpush.bf16.msra.mxu0 %v2022
    %3243 = vmatpush.bf16.msra.mxu0 %v2017
    %3244 = vmatmul.bf16.gmra.mxu0 %v86
    %v3245 = vpop.f32.mrf.mxu0
    %v3246 = vadd.f32 %v3233, %v3245
    %v3247 = vpop.f32.mrf.mxu0
    %3248 = vdwg.mxu0
    %3249 = vmatpush.bf16.msra.mxu0 %v2092
    %3250 = vmatpush.bf16.msra.mxu0 %v2087
    %3251 = vmatpush.bf16.msra.mxu0 %v2082
    %3252 = vmatpush.bf16.msra.mxu0 %v2077
    %3253 = vmatpush.bf16.msra.mxu0 %v2072
    %3254 = vmatpush.bf16.msra.mxu0 %v2067
    %3255 = vmatpush.bf16.msra.mxu0 %v2062
    %3256 = vmatpush.bf16.msra.mxu0 %v2057
    %3257 = vmatmul.bf16.gmra.mxu0 %v87
    %v3258 = vpop.f32.mrf.mxu0
    %v3259 = vadd.f32 %v3246, %v3258
    %v3260 = vpop.f32.mrf.mxu0
    %3261 = vdwg.mxu0
    %3262 = vmatpush.bf16.msra.mxu0 %v2132
    %3263 = vmatpush.bf16.msra.mxu0 %v2127
    %3264 = vmatpush.bf16.msra.mxu0 %v2122
    %3265 = vmatpush.bf16.msra.mxu0 %v2117
    %3266 = vmatpush.bf16.msra.mxu0 %v2112
    %3267 = vmatpush.bf16.msra.mxu0 %v2107
    %3268 = vmatpush.bf16.msra.mxu0 %v2102
    %3269 = vmatpush.bf16.msra.mxu0 %v2097
    %3270 = vmatmul.bf16.gmra.mxu0 %v88
    %v3271 = vpop.f32.mrf.mxu0
    %v3272 = vadd.f32 %v3259, %v3271
    %v3273 = vpop.f32.mrf.mxu0
    %3274 = vdwg.mxu0
    %3275 = vmatpush.bf16.msra.mxu0 %v2172
    %3276 = vmatpush.bf16.msra.mxu0 %v2167
    %3277 = vmatpush.bf16.msra.mxu0 %v2162
    %3278 = vmatpush.bf16.msra.mxu0 %v2157
    %3279 = vmatpush.bf16.msra.mxu0 %v2152
    %3280 = vmatpush.bf16.msra.mxu0 %v2147
    %3281 = vmatpush.bf16.msra.mxu0 %v2142
    %3282 = vmatpush.bf16.msra.mxu0 %v2137
    %3283 = vmatmul.bf16.gmra.mxu0 %v89
    %v3284 = vpop.f32.mrf.mxu0
    %v3285 = vadd.f32 %v3272, %v3284
    %v3286 = vpop.f32.mrf.mxu0
    %3287 = vdwg.mxu0
    %3288 = vmatpush.bf16.msra.mxu0 %v2212
    %3289 = vmatpush.bf16.msra.mxu0 %v2207
    %3290 = vmatpush.bf16.msra.mxu0 %v2202
    %3291 = vmatpush.bf16.msra.mxu0 %v2197
    %3292 = vmatpush.bf16.msra.mxu0 %v2192
    %3293 = vmatpush.bf16.msra.mxu0 %v2187
    %3294 = vmatpush.bf16.msra.mxu0 %v2182
    %3295 = vmatpush.bf16.msra.mxu0 %v2177
    %3296 = vmatmul.bf16.gmra.mxu0 %v90
    %v3297 = vpop.f32.mrf.mxu0
    %v3298 = vadd.f32 %v3285, %v3297
    %v3299 = vpop.f32.mrf.mxu0
    %3300 = vdwg.mxu0
    %3301 = vmatpush.bf16.msra.mxu0 %v2252
    %3302 = vmatpush.bf16.msra.mxu0 %v2247
    %3303 = vmatpush.bf16.msra.mxu0 %v2242
    %3304 = vmatpush.bf16.msra.mxu0 %v2237
    %3305 = vmatpush.bf16.msra.mxu0 %v2232
    %3306 = vmatpush.bf16.msra.mxu0 %v2227
    %3307 = vmatpush.bf16.msra.mxu0 %v2222
    %3308 = vmatpush.bf16.msra.mxu0 %v2217
    %3309 = vmatmul.bf16.gmra.mxu0 %v91
    %v3310 = vpop.f32.mrf.mxu0
    %v3311 = vadd.f32 %v3298, %v3310
    %v3312 = vpop.f32.mrf.mxu0
    %3313 = vdwg.mxu0
    %v3314 = vmax.f32 %v2791, 0.0
    %v3315 = vmax.f32 %v2921, 0.0
    %v3316 = vmax.f32 %v3051, 0.0
    %v3317 = vmax.f32 %v3181, 0.0
    %v3318 = vmax.f32 %v3311, 0.0
    %v3324 = vrot.slane %v3315, 7
    %v3325 = vrot.slane %v3316, 6
    %v3326 = vrot.slane %v3317, 5
    %v3327 = vrot.slane %v3318, 4
    %vm3328 = vcmask 1040384
    %v3329 = vsel %vm3328, %v3314, %v3324
    %vm3330 = vcmask 1041408
    %v3331 = vsel %vm3330, %v3329, %v3325
    %vm3332 = vcmask 1043459
    %v3333 = vsel %vm3332, %v3326, %v3327
    %vm3334 = vcmask 1042432
    %v3335 = vsel %vm3334, %v3331, %v3333
    %v3337 = vlaneseq
    %vm3338 = vcmp.ge.s32.totalorder %v3337, 0
    %vm3339 = vcmp.lt.s32.totalorder %v3337, 640
    %vm3340 = vmand %vm3338, %vm3339
    %3341 = vst.msk [vmem:[#allocation8] sm:$0x1f] %vm3340, %v3335
    // Predicated region
    $region26: #{tpu_custom_call.1} parent=1 // pred_check
      _
    $region27: #{tpu_custom_call.1} parent=1 // pred_check_branch
      %3343 = sbr.rel (0) target = $region29
    $region28: #{tpu_custom_call.1} parent=1 // pred_region
      %3345 = vsyncadd [#allocation4], 0
      %s3347 = sshll.u32 [#allocation8], 4
      %s3348 = int_to_ptr.vmem [resolvable:$true] %s3347
      %s3349 = sshll.u32 %s3, 4
      %s3350 = int_to_ptr.hbm [resolvable:$true] %s3349
      %3352 = dma.vmem_to_hbm [thread:$0]  %s3348, 80, %s3350, [#allocation4]
    $region29: #{tpu_custom_call.1} parent=1 // pred_fallthru
      _
    // Predicated region
    $region30: #{tpu_custom_call.1} parent=1 // pred_check
      _
    $region31: #{tpu_custom_call.1} parent=1 // pred_check_branch
      %3354 = sbr.rel (0) target = $region33
    $region32: #{tpu_custom_call.1} parent=1 // pred_region
      %3356 = dma.done [#allocation4], 80
    $region33: #{tpu_custom_call.1} parent=1 // pred_fallthru
      _
    %3357 = vsyncpa [#allocation3], 1
    %3358 = vsyncpa [#allocation6], 1
    %3359 = vsyncpa [#allocation4], 1

</llo_original>
